<compile_context>
chip_gen: v5e
topology: v5e:2x2
jax: 0.10.0
libtpu: 0.0.40
codegen_flags: <defaults>
</compile_context>

<pallas_src>
import functools
import math

import numpy as np

import jax
import jax.numpy as jnp
from jax.experimental import pallas as pl
from jax.experimental.pallas import tpu as pltpu


def _interp_matrix_np(out_size: int, in_size: int) -> np.ndarray:
    """Row-stochastic bilinear interpolation matrix, align_corners=False."""
    scale = in_size / out_size
    i = np.arange(out_size, dtype=np.float64)
    src = np.maximum((i + 0.5) * scale - 0.5, 0.0)   # PyTorch clamps low end
    idx0 = np.minimum(np.floor(src).astype(np.int64), in_size - 1)
    idx1 = np.minimum(idx0 + 1, in_size - 1)
    lam1 = src - idx0
    lam0 = 1.0 - lam1
    w = np.zeros((out_size, in_size), np.float64)
    rows = np.arange(out_size)
    np.add.at(w, (rows, idx0), lam0)
    np.add.at(w, (rows, idx1), lam1)
    return w


def _resize_kernel(x_ref, wh_ref, wwt_ref, o_ref):
    # x_ref:   (n_blk, H_in, W_in)
    # wh_ref:  (H_out, H_in)
    # wwt_ref: (W_in, W_out)
    # o_ref:   (n_blk * H_out, W_out)   -- flat output slab for this block
    n_blk, h_in, w_in = x_ref.shape
    h_out = wh_ref.shape[0]

    x = x_ref[...]
    wh = wh_ref[...]

    # Stage 1 (cheap): per-plane H interpolation, batched einsum, K = H_in.
    whb = jnp.broadcast_to(wh, (n_blk, h_out, h_in))
    tmp = jnp.einsum("noh,nhw->now", whb, x,
                     preferred_element_type=jnp.float32)   # (n_blk, H_out, W_in) f32

    # Stage 2 (heavy): single large-M MXU matmul; Wwt resident across the
    # whole plane block.  Cast back to the input dtype so bf16 inputs use the
    # native bf16 MXU path (f32 accumulation).
    tmp2 = tmp.astype(x_ref.dtype).reshape(n_blk * h_out, w_in)
    out = jnp.dot(tmp2, wwt_ref[...],
                  preferred_element_type=jnp.float32)      # (n_blk*H_out, W_out)

    o_ref[...] = out.astype(o_ref.dtype)


def _cdiv(a, b):
    return -(-a // b)


def _round_up(a, m):
    return _cdiv(a, m) * m


@functools.partial(jax.jit, static_argnames=("size",))
def resize_bilinear(x, size=(224, 224)):
    """x: (B, C, H, W) float array -> (B, C, size[0], size[1])."""
    b, c, h_in, w_in = x.shape
    h_out, w_out = size
    n = b * c

    # Interp matrices follow the data dtype for bf16 models, else f32.
    wdtype = jnp.bfloat16 if x.dtype == jnp.bfloat16 else jnp.float32
    wh_np = _interp_matrix_np(h_out, h_in)                    # (H_out, H_in)
    wwt_np = _interp_matrix_np(w_out, w_in).T                 # (W_in, W_out)
    wh = jnp.asarray(wh_np, dtype=wdtype)
    wwt = jnp.asarray(wwt_np, dtype=wdtype)

    # ---- plane-batch tiling -------------------------------------------------
    itemsize = jnp.dtype(x.dtype).itemsize
    out_bytes_per_plane = h_out * w_out * itemsize
    # Keep the double-buffered output block comfortably inside VMEM
    # (<= ~12 MiB double-buffered) and cap at 32 planes/step.
    max_planes = max(1, min(32, (6 * 1024 * 1024) // max(out_bytes_per_plane, 1)))
    steps = _cdiv(n, max_planes)
    if steps < 2 and n > 1:
        steps = 2          # >=2 grid steps: pipeline DMA/compute, feed both v7x TCs
    n_blk = _cdiv(n, steps)
    # Keep the flat output block (n_blk*H_out, W_out) sublane-aligned.
    f = 8 // math.gcd(h_out, 8)
    n_blk = _round_up(n_blk, f)
    grid = _cdiv(n, n_blk)
    n_pad = grid * n_blk

    x_flat = x.reshape(n, h_in, w_in)
    if n_pad != n:
        x_flat = jnp.pad(x_flat, ((0, n_pad - n), (0, 0), (0, 0)))

    witemsize = jnp.dtype(wdtype).itemsize
    cost = pl.CostEstimate(
        flops=2 * n * h_out * (h_in * w_in + w_in * w_out),
        transcendentals=0,
        bytes_accessed=(n * (h_in * w_in + h_out * w_out)) * itemsize
        + (h_out * h_in + w_in * w_out) * witemsize,
    )

    out_flat = pl.pallas_call(
        _resize_kernel,
        out_shape=jax.ShapeDtypeStruct((n_pad * h_out, w_out), x.dtype),
        grid_spec=pltpu.PrefetchScalarGridSpec(
            num_scalar_prefetch=0,
            grid=(grid,),
            in_specs=[
                pl.BlockSpec((n_blk, h_in, w_in), lambda i: (i, 0, 0)),
                pl.BlockSpec((h_out, h_in), lambda i: (0, 0)),
                pl.BlockSpec((w_in, w_out), lambda i: (0, 0)),
            ],
            out_specs=pl.BlockSpec((n_blk * h_out, w_out), lambda i: (i, 0)),
        ),
        compiler_params=pltpu.CompilerParams(
            dimension_semantics=("parallel",),
            vmem_limit_bytes=48 * 1024 * 1024,
        ),
        cost_estimate=cost,
    )(x_flat, wh, wwt)

    out = out_flat.reshape(n_pad, h_out, w_out)[:n]
    return out.reshape(b, c, h_out, w_out)


def _reference_resize(x, size):
    """Pure-JAX gather reference of torch bilinear, align_corners=False."""
    b, c, h_in, w_in = x.shape
    h_out, w_out = size

    def axis_idx(out_size, in_size):
        scale = in_size / out_size
        i = jnp.arange(out_size, dtype=jnp.float32)
        src = jnp.maximum((i + 0.5) * scale - 0.5, 0.0)
        i0 = jnp.minimum(jnp.floor(src).astype(jnp.int32), in_size - 1)
        i1 = jnp.minimum(i0 + 1, in_size - 1)
        l1 = src - i0.astype(jnp.float32)
        return i0, i1, l1

    y0, y1, ly = axis_idx(h_out, h_in)
    x0, x1, lx = axis_idx(w_out, w_in)

    top = x[:, :, y0, :] * (1.0 - ly)[None, None, :, None] + \
          x[:, :, y1, :] * ly[None, None, :, None]            # (B,C,H_out,W_in)
    out = top[:, :, :, x0] * (1.0 - lx)[None, None, None, :] + \
          top[:, :, :, x1] * lx[None, None, None, :]          # (B,C,H_out,W_out)
    return out


if __name__ == "__main__":
    key = jax.random.PRNGKey(0)
    x = jax.random.normal(key, (2, 4, 16, 16), dtype=jnp.float32)
    size = (224, 224)  # module default

    out = resize_bilinear(x, size=size)
    out = jax.block_until_ready(out)

    ref = _reference_resize(x, size)
    assert out.shape == (2, 4, size[0], size[1])
    assert jnp.allclose(out, ref, atol=1e-5, rtol=1e-5), "mismatch vs reference"

    print("KERNEL_OK")
</pallas_src>

<mosaic_0001>
module attributes {stable_mosaic.version = 11 : i64} {
  func.func @_resize_kernel(%arg0: i32, %arg1: memref<4x16x16xf32, #tpu.memory_space<vmem>>, %arg2: memref<224x16xf32, #tpu.memory_space<vmem>>, %arg3: memref<16x224xf32, #tpu.memory_space<vmem>>, %arg4: memref<896x224xf32, #tpu.memory_space<vmem>>) attributes {dimension_semantics = [#tpu.dimension_semantics<parallel>], iteration_bounds = array<i64: 2>, scalar_prefetch = 0 : i64, scratch_operands = 0 : i64, tpu.core_type = #tpu.core_type<tc>, window_params = [{transform_indices = @transform_0, window_bounds = array<i64: 4, 16, 16>}, {pipeline_mode = #tpu.pipeline_mode<synchronous>, transform_indices = @transform_1, window_bounds = array<i64: 224, 16>}, {pipeline_mode = #tpu.pipeline_mode<synchronous>, transform_indices = @transform_2, window_bounds = array<i64: 16, 224>}, {transform_indices = @transform_3, window_bounds = array<i64: 896, 224>}]} {
    %c0 = arith.constant 0 : index
    %c0_0 = arith.constant 0 : index
    %c0_1 = arith.constant 0 : index
    %0 = vector.load %arg1[%c0, %c0_0, %c0_1] : memref<4x16x16xf32, #tpu.memory_space<vmem>>, vector<4x16x16xf32>
    %c0_2 = arith.constant 0 : index
    %c0_3 = arith.constant 0 : index
    %1 = vector.load %arg2[%c0_2, %c0_3] : memref<224x16xf32, #tpu.memory_space<vmem>>, vector<224x16xf32>
    %2 = vector.shape_cast %1 : vector<224x16xf32> to vector<1x224x16xf32>
    %3 = vector.broadcast %2 : vector<1x224x16xf32> to vector<4x224x16xf32>
    "tpu.trace_start"() <{level = 10 : i32, message = "noh,nhw->now"}> : () -> ()
    %cst = arith.constant dense<0.000000e+00> : vector<4x224x16xf32>
    %4 = tpu.matmul %3, %0, %cst {dimension_numbers = #tpu.dot_dimension_numbers<[2], [1], [1], [2], [0, 0, 0, 1, 1, 2], [0], [0]>} : vector<4x224x16xf32>, vector<4x16x16xf32>, vector<4x224x16xf32> -> vector<4x224x16xf32>
    "tpu.trace_stop"() : () -> ()
    %5 = vector.shape_cast %4 : vector<4x224x16xf32> to vector<896x16xf32>
    %c0_4 = arith.constant 0 : index
    %c0_5 = arith.constant 0 : index
    %6 = vector.load %arg3[%c0_4, %c0_5] : memref<16x224xf32, #tpu.memory_space<vmem>>, vector<16x224xf32>
    %cst_6 = arith.constant dense<0.000000e+00> : vector<896x224xf32>
    %7 = tpu.matmul %5, %6, %cst_6 {dimension_numbers = #tpu.dot_dimension_numbers<[1], [0], [0], [1], [0, 0, 1, 1], [], []>} : vector<896x16xf32>, vector<16x224xf32>, vector<896x224xf32> -> vector<896x224xf32>
    %c0_7 = arith.constant 0 : index
    %c0_8 = arith.constant 0 : index
    %8 = vector.load %arg4[%c0_7, %c0_8] : memref<896x224xf32, #tpu.memory_space<vmem>>, vector<896x224xf32>
    tpu.vector_store %arg4[%c0_7, %c0_8], %7 {strides = array<i32>} : memref<896x224xf32, #tpu.memory_space<vmem>>, vector<896x224xf32>,
    return
  }
  func.func @transform_0(%arg0: i32) -> (i32, i32, i32) {
    %c0_i32 = arith.constant 0 : i32
    %c0_i32_0 = arith.constant 0 : i32
    %c0_i32_1 = arith.constant 0 : i32
    return %arg0, %c0_i32, %c0_i32_0 : i32, i32, i32
  }
  func.func @transform_1(%arg0: i32) -> (i32, i32) {
    %c0_i32 = arith.constant 0 : i32
    %c0_i32_0 = arith.constant 0 : i32
    %c0_i32_1 = arith.constant 0 : i32
    return %c0_i32, %c0_i32_0 : i32, i32
  }
  func.func @transform_2(%arg0: i32) -> (i32, i32) {
    %c0_i32 = arith.constant 0 : i32
    %c0_i32_0 = arith.constant 0 : i32
    %c0_i32_1 = arith.constant 0 : i32
    return %c0_i32, %c0_i32_0 : i32, i32
  }
  func.func @transform_3(%arg0: i32) -> (i32, i32) {
    %c0_i32 = arith.constant 0 : i32
    %c0_i32_0 = arith.constant 0 : i32
    return %arg0, %c0_i32 : i32, i32
  }
}

</mosaic_0001>

<llo_original>
// kernel: resize_bilinear.1
$region0: #{resize_bilinear.1}
  #allocation0 [shape = 'u32[]', space=smem, size = 0x4, offset = 0x4, fixed_abs, tag = 'smem constant byte address 0x4 - core index']
  #allocation1 [shape = 'u32[72,128]{1,0:T(1,128)}', space=vmem, size = 0x9000, scoped, tag = 'internal scratch']
  %s0 = inlined_call_operand.hbm [shape: f32[8,16,16], index: 0, kind: input, shape index: {}]
  %s1 = inlined_call_operand.hbm [shape: f32[224,16], index: 1, kind: input, shape index: {}]
  %s2 = inlined_call_operand.hbm [shape: f32[16,224], index: 2, kind: input, shape index: {}]
  %s3 = inlined_call_operand.hbm [shape: f32[1792,224], index: 3, kind: output, shape index: {}]
  %s4 = sld [smem:[#allocation0]]
  $region57: #{resize_bilinear.1} parent=0
    _
  %s6 = ssub.s32 1, %s4
  %s7 = scalar_select 0, %s6, %s4
  $region1: #{resize_bilinear.1} parent=0
    #allocation2 [shape = 'u8[65536]{0}', space=vmem, size = 0x10000, scoped, tag = 'input window, operand 0']
    #allocation3 [shape = 's32[2]{0}', space=sflag, size = 0x8, scoped, tag = 'scoped memory for resize_bilinear.1']
    #allocation4 [shape = 's32[2]{0}', space=sflag, size = 0x8, scoped, tag = 'scoped memory for resize_bilinear.1']
    #allocation5 [shape = 'u8[114688]{0}', space=vmem, size = 0x1c000, scoped, tag = 'input window, operand 1, single buffered']
    #allocation6 [shape = 's32[1]{0}', space=sflag, size = 0x4, scoped, tag = 'scoped memory for resize_bilinear.1']
    #allocation7 [shape = 'u8[16384]{0}', space=vmem, size = 0x4000, scoped, tag = 'input window, operand 2, single buffered']
    #allocation8 [shape = 'u8[1835008]{0}', space=vmem, size = 0x1c0000, scoped, tag = 'output window, operand 0']
    %8 = vsyncpa [#allocation3], 0
    %s9 = scalar_lea.sflag [#allocation3], 1
    %10 = vsyncpa %s9, 0
    %11 = vsyncpa [#allocation6], 0
    %12 = vsyncpa [#allocation4], 0
    %s13 = scalar_lea.sflag [#allocation4], 1
    %14 = vsyncpa %s13, 0
    loop: start=0, step=1, limit=4
    $region2: #{resize_bilinear.1} parent=1 // loop_pre_header
      _
    $region3: #{resize_bilinear.1} parent=1 // loop_header
      %s16 = sphi 0, %s20
      %p17 = scmp.ge.s32.totalorder %s16, 4
      %s26 = sphi 0, %s28
      %s29 = sphi 0, %s26
      %s30 = sphi 0, %s29
      %s46 = sphi 0, %s30
      %s50 = sphi 0, %s50
      %s52 = sphi 0, %s50
      %s53 = sphi 0, %s52
      %s67 = sphi 0, %s53
      %s71 = sphi 0, %s71
      %s73 = sphi 0, %s71
      %s74 = sphi 0, %s73
      %s88 = sphi 0, %s74
      %s94 = sphi 0, %s96
      %s97 = sphi 0, %s94
      %s98 = sphi 0, %s97
      %s114 = sphi 0, %s98
    $region4: #{resize_bilinear.1} parent=1 // loop_header_branch
      %19 = sbr.rel (%p17) target = $region8
    $region5: #{resize_bilinear.1} parent=1 // loop_body
      %s21 = ssub.s32 %s16, 1
      %s22 = ssub.s32 %s16, 2
      %s23 = sadd.s32 %s16, 1
      %s24 = ssub.s32 %s16, %s23
      %p25 = scmp.eq.s32.totalorder %s24, 0
      %s27 = sadd.s32 %s26, 1
      %s28 = scalar_select %p25, %s26, %s27
      %p31 = pneg %p25
      %p32 = scmp.eq.s32.totalorder %s16, 1
      %p33 = por %p31, %p32
      %p34 = scmp.ne.s32.totalorder %s26, %s29
      %p35 = scmp.eq.s32.totalorder %s16, 0
      %p36 = por %p34, %p35
      %p37 = scmp.ne.s32.totalorder %s26, %s29
      %p38 = scmp.eq.s32.totalorder %s21, 1
      %p39 = por %p37, %p38
      %p40 = scmp.ne.s32.totalorder %s29, %s30
      %p41 = scmp.eq.s32.totalorder %s21, 0
      %p42 = por %p40, %p41
      %p43 = scmp.ne.s32.totalorder %s29, %s30
      %p44 = scmp.eq.s32.totalorder %s22, 1
      %p45 = por %p43, %p44
      %p47 = scmp.ne.s32.totalorder %s30, %s46
      %p48 = scmp.eq.s32.totalorder %s22, 0
      %p49 = por %p47, %p48
      %s51 = sadd.s32 %s50, 1
      %p54 = scmp.eq.s32.totalorder %s16, 1
      %p55 = scmp.ne.s32.totalorder %s50, %s52
      %p56 = scmp.eq.s32.totalorder %s16, 0
      %p57 = por %p55, %p56
      %p58 = scmp.ne.s32.totalorder %s50, %s52
      %p59 = scmp.eq.s32.totalorder %s21, 1
      %p60 = por %p58, %p59
      %p61 = scmp.ne.s32.totalorder %s52, %s53
      %p62 = scmp.eq.s32.totalorder %s21, 0
      %p63 = por %p61, %p62
      %p64 = scmp.ne.s32.totalorder %s52, %s53
      %p65 = scmp.eq.s32.totalorder %s22, 1
      %p66 = por %p64, %p65
      %p68 = scmp.ne.s32.totalorder %s53, %s67
      %p69 = scmp.eq.s32.totalorder %s22, 0
      %p70 = por %p68, %p69
      %s72 = sadd.s32 %s71, 1
      %p75 = scmp.eq.s32.totalorder %s16, 1
      %p76 = scmp.ne.s32.totalorder %s71, %s73
      %p77 = scmp.eq.s32.totalorder %s16, 0
      %p78 = por %p76, %p77
      %p79 = scmp.ne.s32.totalorder %s71, %s73
      %p80 = scmp.eq.s32.totalorder %s21, 1
      %p81 = por %p79, %p80
      %p82 = scmp.ne.s32.totalorder %s73, %s74
      %p83 = scmp.eq.s32.totalorder %s21, 0
      %p84 = por %p82, %p83
      %p85 = scmp.ne.s32.totalorder %s73, %s74
      %p86 = scmp.eq.s32.totalorder %s22, 1
      %p87 = por %p85, %p86
      %p89 = scmp.ne.s32.totalorder %s74, %s88
      %p90 = scmp.eq.s32.totalorder %s22, 0
      %p91 = por %p89, %p90
      %s92 = ssub.s32 %s16, %s23
      %p93 = scmp.eq.s32.totalorder %s92, 0
      %s95 = sadd.s32 %s94, 1
      %s96 = scalar_select %p93, %s94, %s95
      %p99 = pneg %p93
      %p100 = scmp.eq.s32.totalorder %s16, 1
      %p101 = por %p99, %p100
      %p102 = scmp.ne.s32.totalorder %s94, %s97
      %p103 = scmp.eq.s32.totalorder %s16, 0
      %p104 = por %p102, %p103
      %p105 = scmp.ne.s32.totalorder %s94, %s97
      %p106 = scmp.eq.s32.totalorder %s21, 1
      %p107 = por %p105, %p106
      %p108 = scmp.ne.s32.totalorder %s97, %s98
      %p109 = scmp.eq.s32.totalorder %s21, 0
      %p110 = por %p108, %p109
      %p111 = scmp.ne.s32.totalorder %s97, %s98
      %p112 = scmp.eq.s32.totalorder %s22, 1
      %p113 = por %p111, %p112
      %p115 = scmp.ne.s32.totalorder %s98, %s114
      %p116 = scmp.eq.s32.totalorder %s22, 0
      %p117 = por %p115, %p116
      %p118 = scmp.le.s32.totalorder 1, %s16
      %p119 = scmp.lt.s32.totalorder %s16, 3
      %p120 = pnand %p118, %p119
      %p121 = pneg %p120
      // Predicated region
      $region9: #{resize_bilinear.1} parent=5 // pred_check
        _
      $region10: #{resize_bilinear.1} parent=5 // pred_check_branch
        %123 = sbr.rel (%p120) target = $region12
      $region11: #{resize_bilinear.1} parent=5 // pred_region
        %s124 = ssub.s32 %s16, 1
        // Predicated region
        $region13: #{resize_bilinear.1} parent=11 // pred_check
          %p125 = pneg %p63
        $region14: #{resize_bilinear.1} parent=11 // pred_check_branch
          %127 = sbr.rel (%p125) target = $region16
        $region15: #{resize_bilinear.1} parent=11 // pred_region
          %129 = vsyncadd [#allocation6], 0
          %s130 = sshll.u32 %s1, 4
          %s131 = int_to_ptr.hbm [resolvable:$true] %s130
          %s132 = sshll.u32 [#allocation5], 4
          %s133 = int_to_ptr.vmem [resolvable:$true] %s132
          %138 = dma.hbm_to_vmem [thread:$0]  %s131, 3584, %s133, [#allocation6], 128, 128, 8
        $region16: #{resize_bilinear.1} parent=11 // pred_fallthru
          _
        // Predicated region
        $region17: #{resize_bilinear.1} parent=11 // pred_check
          %p139 = pneg %p84
        $region18: #{resize_bilinear.1} parent=11 // pred_check_branch
          %141 = sbr.rel (%p139) target = $region20
        $region19: #{resize_bilinear.1} parent=11 // pred_region
          %143 = vsyncadd [#allocation6], 0
          %s144 = sshll.u32 %s2, 4
          %s145 = int_to_ptr.hbm [resolvable:$true] %s144
          %s146 = sshll.u32 [#allocation7], 4
          %s147 = int_to_ptr.vmem [resolvable:$true] %s146
          %152 = dma.hbm_to_vmem [thread:$0]  %s145, 512, %s147, [#allocation6], 256, 256, 16
        $region20: #{resize_bilinear.1} parent=11 // pred_fallthru
          _
      $region12: #{resize_bilinear.1} parent=5 // pred_fallthru
        _
      %p153 = scmp.lt.s32.totalorder %s16, 2
      // Predicated region
      $region21: #{resize_bilinear.1} parent=5 // pred_check
        %p154 = pneg %p153
      $region22: #{resize_bilinear.1} parent=5 // pred_check_branch
        %156 = sbr.rel (%p154) target = $region24
      $region23: #{resize_bilinear.1} parent=5 // pred_region
        // Predicated region
        $region25: #{resize_bilinear.1} parent=23 // pred_check
          %p157 = pneg %p36
        $region26: #{resize_bilinear.1} parent=23 // pred_check_branch
          %159 = sbr.rel (%p157) target = $region28
        $region27: #{resize_bilinear.1} parent=23 // pred_region
          %s160 = sand.u32 %s26, 1
          %s161 = scalar_lea.sflag [#allocation3], %s160
          %s162 = sand.u32 %s26, 1
          %s163 = smul.addr %s162, 64
          %s164 = scalar_lea.vmem [#allocation2], %s163
          %s165 = smul.u32 4, %s16
          %167 = vsyncadd %s161, 0
          %s168 = smul.addr %s165, 2
          %s169 = smul.addr %s168, 8
          %s170 = scalar_lea.hbm %s0, %s169
          %s171 = sshll.u32 %s170, 4
          %s172 = int_to_ptr.hbm [resolvable:$true] %s171
          %s173 = sshll.u32 %s164, 4
          %s174 = int_to_ptr.vmem [resolvable:$true] %s173
          %179 = dma.hbm_to_vmem [thread:$0]  %s172, 1024, %s174, %s161, 128, 128, 8
        $region28: #{resize_bilinear.1} parent=23 // pred_fallthru
          _
      $region24: #{resize_bilinear.1} parent=5 // pred_fallthru
        _
      %p180 = scmp.le.s32.totalorder 1, %s16
      %p181 = scmp.lt.s32.totalorder %s16, 3
      %p182 = pnand %p180, %p181
      %p183 = pneg %p182
      // Predicated region
      $region29: #{resize_bilinear.1} parent=5 // pred_check
        _
      $region30: #{resize_bilinear.1} parent=5 // pred_check_branch
        %185 = sbr.rel (%p182) target = $region32
      $region31: #{resize_bilinear.1} parent=5 // pred_region
        %s186 = ssub.s32 %s16, 1
        %s187 = sand.u32 %s29, 1
        %s188 = scalar_lea.sflag [#allocation3], %s187
        %s189 = sand.u32 %s29, 1
        %s190 = smul.addr %s189, 64
        %s191 = scalar_lea.vmem [#allocation2], %s190
        // Predicated region
        $region33: #{resize_bilinear.1} parent=31 // pred_check
          %p192 = pneg %p42
        $region34: #{resize_bilinear.1} parent=31 // pred_check_branch
          %194 = sbr.rel (%p192) target = $region36
        $region35: #{resize_bilinear.1} parent=31 // pred_region
          %196 = dma.done %s188, 1024
        $region36: #{resize_bilinear.1} parent=31 // pred_fallthru
          _
        // Predicated region
        $region37: #{resize_bilinear.1} parent=31 // pred_check
          %p197 = pneg %p63
        $region38: #{resize_bilinear.1} parent=31 // pred_check_branch
          %199 = sbr.rel (%p197) target = $region40
        $region39: #{resize_bilinear.1} parent=31 // pred_region
          %201 = dma.done [#allocation6], 3584
        $region40: #{resize_bilinear.1} parent=31 // pred_fallthru
          _
        // Predicated region
        $region41: #{resize_bilinear.1} parent=31 // pred_check
          %p202 = pneg %p84
        $region42: #{resize_bilinear.1} parent=31 // pred_check_branch
          %204 = sbr.rel (%p202) target = $region44
        $region43: #{resize_bilinear.1} parent=31 // pred_region
          %206 = dma.done [#allocation6], 512
        $region44: #{resize_bilinear.1} parent=31 // pred_fallthru
          _
        %s207 = sand.u32 %s29, 1
        %s208 = scalar_lea.sflag [#allocation3], %s207
        %s209 = sand.u32 %s29, 1
        %s210 = smul.addr %s209, 64
        %s211 = scalar_lea.vmem [#allocation2], %s210
        %p212 = pneg %p42
        %p213 = pneg %p39
        %p214 = pneg %p63
        %p215 = pneg %p60
        %p216 = pneg %p84
        %p217 = pneg %p81
        %p218 = pneg %p110
        %p219 = pneg %p107
        %s220 = sand.u32 %s97, 1
        %s221 = scalar_lea.sflag [#allocation4], %s220
        %s222 = sand.u32 %s97, 1
        %s223 = smul.addr %s222, 1792
        %s224 = scalar_lea.vmem [#allocation8], %s223
        %s225 = smul.u32 4, %s21
        %s226 = smul.u32 112, %s21
        %v227 = vld [vmem:[%s191] sm:$0xff]
        %v228 = vld [vmem:[%s191 + $0x8] sm:$0xff]
        %v229 = vld [vmem:[%s191 + $0x10] sm:$0xff]
        %v230 = vld [vmem:[%s191 + $0x18] sm:$0xff]
        %v231 = vld [vmem:[%s191 + $0x20] sm:$0xff]
        %v232 = vld [vmem:[%s191 + $0x28] sm:$0xff]
        %v233 = vld [vmem:[%s191 + $0x30] sm:$0xff]
        %v234 = vld [vmem:[%s191 + $0x38] sm:$0xff]
        %v235 = vld [vmem:[#allocation5] sm:$0xff]
        %v236 = vld [vmem:[#allocation5 + $0x8] sm:$0xff]
        %v237 = vld [vmem:[#allocation5 + $0x10] sm:$0xff]
        %v238 = vld [vmem:[#allocation5 + $0x18] sm:$0xff]
        %v239 = vld [vmem:[#allocation5 + $0x20] sm:$0xff]
        %v240 = vld [vmem:[#allocation5 + $0x28] sm:$0xff]
        %v241 = vld [vmem:[#allocation5 + $0x30] sm:$0xff]
        %v242 = vld [vmem:[#allocation5 + $0x38] sm:$0xff]
        %v243 = vld [vmem:[#allocation5 + $0x40] sm:$0xff]
        %v244 = vld [vmem:[#allocation5 + $0x48] sm:$0xff]
        %v245 = vld [vmem:[#allocation5 + $0x50] sm:$0xff]
        %v246 = vld [vmem:[#allocation5 + $0x58] sm:$0xff]
        %v247 = vld [vmem:[#allocation5 + $0x60] sm:$0xff]
        %v248 = vld [vmem:[#allocation5 + $0x68] sm:$0xff]
        %v249 = vld [vmem:[#allocation5 + $0x70] sm:$0xff]
        %v250 = vld [vmem:[#allocation5 + $0x78] sm:$0xff]
        %v251 = vld [vmem:[#allocation5 + $0x80] sm:$0xff]
        %v252 = vld [vmem:[#allocation5 + $0x88] sm:$0xff]
        %v253 = vld [vmem:[#allocation5 + $0x90] sm:$0xff]
        %v254 = vld [vmem:[#allocation5 + $0x98] sm:$0xff]
        %v255 = vld [vmem:[#allocation5 + $0xa0] sm:$0xff]
        %v256 = vld [vmem:[#allocation5 + $0xa8] sm:$0xff]
        %v257 = vld [vmem:[#allocation5 + $0xb0] sm:$0xff]
        %v258 = vld [vmem:[#allocation5 + $0xb8] sm:$0xff]
        %v259 = vld [vmem:[#allocation5 + $0xc0] sm:$0xff]
        %v260 = vld [vmem:[#allocation5 + $0xc8] sm:$0xff]
        %v261 = vld [vmem:[#allocation5 + $0xd0] sm:$0xff]
        %v262 = vld [vmem:[#allocation5 + $0xd8] sm:$0xff]
        %vm263 = vcmask 130048
        %v265 = vsel %vm263, %v235, 0
        %v268 = vsel %vm263, %v236, 0
        %v271 = vsel %vm263, %v237, 0
        %v274 = vsel %vm263, %v238, 0
        %v277 = vsel %vm263, %v239, 0
        %v280 = vsel %vm263, %v240, 0
        %v283 = vsel %vm263, %v241, 0
        %v286 = vsel %vm263, %v242, 0
        %v289 = vsel %vm263, %v243, 0
        %v292 = vsel %vm263, %v244, 0
        %v295 = vsel %vm263, %v245, 0
        %v298 = vsel %vm263, %v246, 0
        %v301 = vsel %vm263, %v247, 0
        %v304 = vsel %vm263, %v248, 0
        %v307 = vsel %vm263, %v249, 0
        %v310 = vsel %vm263, %v250, 0
        %v313 = vsel %vm263, %v251, 0
        %v316 = vsel %vm263, %v252, 0
        %v319 = vsel %vm263, %v253, 0
        %v322 = vsel %vm263, %v254, 0
        %v325 = vsel %vm263, %v255, 0
        %v328 = vsel %vm263, %v256, 0
        %v331 = vsel %vm263, %v257, 0
        %v334 = vsel %vm263, %v258, 0
        %v337 = vsel %vm263, %v259, 0
        %v340 = vsel %vm263, %v260, 0
        %v343 = vsel %vm263, %v261, 0
        %v346 = vsel %vm263, %v262, 0
        %348 = vmatpush.msra.mxu0 0.0
        %349 = vmatpush.msra.mxu0 0.0
        %350 = vmatpush.msra.mxu0 0.0
        %351 = vmatpush.msra.mxu0 0.0
        %352 = vmatpush.msra.mxu0 0.0
        %353 = vmatpush.msra.mxu0 0.0
        %354 = vmatpush.msra.mxu0 0.0
        %355 = vmatpush.msra.mxu0 0.0
        %356 = vmatpush.msra.mxu0 0.0
        %357 = vmatpush.msra.mxu0 0.0
        %358 = vmatpush.msra.mxu0 0.0
        %359 = vmatpush.msra.mxu0 0.0
        %360 = vmatpush.msra.mxu0 0.0
        %361 = vmatpush.msra.mxu0 0.0
        %362 = vmatpush.msra.mxu0 %v228
        %363 = vmatpush.msra.mxu0 %v227
        %364 = vmatmul.f32.gmra.mxu0 %v265
        %v365 = vpop.f32.mrf.mxu0
        %v366 = vadd.f32 0.0, %v365
        %367 = vmatmul.f32.gmra.mxu0 %v268
        %v368 = vpop.f32.mrf.mxu0
        %v369 = vadd.f32 0.0, %v368
        %370 = vmatmul.f32.gmra.mxu0 %v271
        %v371 = vpop.f32.mrf.mxu0
        %v372 = vadd.f32 0.0, %v371
        %373 = vmatmul.f32.gmra.mxu0 %v274
        %v374 = vpop.f32.mrf.mxu0
        %v375 = vadd.f32 0.0, %v374
        %376 = vmatmul.f32.gmra.mxu0 %v277
        %v377 = vpop.f32.mrf.mxu0
        %v378 = vadd.f32 0.0, %v377
        %379 = vmatmul.f32.gmra.mxu0 %v280
        %v380 = vpop.f32.mrf.mxu0
        %v381 = vadd.f32 0.0, %v380
        %382 = vmatmul.f32.gmra.mxu0 %v283
        %v383 = vpop.f32.mrf.mxu0
        %v384 = vadd.f32 0.0, %v383
        %385 = vmatmul.f32.gmra.mxu0 %v286
        %v386 = vpop.f32.mrf.mxu0
        %v387 = vadd.f32 0.0, %v386
        %388 = vmatmul.f32.gmra.mxu0 %v289
        %v389 = vpop.f32.mrf.mxu0
        %v390 = vadd.f32 0.0, %v389
        %391 = vmatmul.f32.gmra.mxu0 %v292
        %v392 = vpop.f32.mrf.mxu0
        %v393 = vadd.f32 0.0, %v392
        %394 = vmatmul.f32.gmra.mxu0 %v295
        %v395 = vpop.f32.mrf.mxu0
        %v396 = vadd.f32 0.0, %v395
        %397 = vmatmul.f32.gmra.mxu0 %v298
        %v398 = vpop.f32.mrf.mxu0
        %v399 = vadd.f32 0.0, %v398
        %400 = vmatmul.f32.gmra.mxu0 %v301
        %v401 = vpop.f32.mrf.mxu0
        %v402 = vadd.f32 0.0, %v401
        %403 = vmatmul.f32.gmra.mxu0 %v304
        %v404 = vpop.f32.mrf.mxu0
        %v405 = vadd.f32 0.0, %v404
        %406 = vmatmul.f32.gmra.mxu0 %v307
        %v407 = vpop.f32.mrf.mxu0
        %v408 = vadd.f32 0.0, %v407
        %409 = vmatmul.f32.gmra.mxu0 %v310
        %v410 = vpop.f32.mrf.mxu0
        %v411 = vadd.f32 0.0, %v410
        %412 = vmatmul.f32.gmra.mxu0 %v313
        %v413 = vpop.f32.mrf.mxu0
        %v414 = vadd.f32 0.0, %v413
        %415 = vmatmul.f32.gmra.mxu0 %v316
        %v416 = vpop.f32.mrf.mxu0
        %v417 = vadd.f32 0.0, %v416
        %418 = vmatmul.f32.gmra.mxu0 %v319
        %v419 = vpop.f32.mrf.mxu0
        %v420 = vadd.f32 0.0, %v419
        %421 = vmatmul.f32.gmra.mxu0 %v322
        %v422 = vpop.f32.mrf.mxu0
        %v423 = vadd.f32 0.0, %v422
        %424 = vmatmul.f32.gmra.mxu0 %v325
        %v425 = vpop.f32.mrf.mxu0
        %v426 = vadd.f32 0.0, %v425
        %427 = vmatmul.f32.gmra.mxu0 %v328
        %v428 = vpop.f32.mrf.mxu0
        %v429 = vadd.f32 0.0, %v428
        %430 = vmatmul.f32.gmra.mxu0 %v331
        %v431 = vpop.f32.mrf.mxu0
        %v432 = vadd.f32 0.0, %v431
        %433 = vmatmul.f32.gmra.mxu0 %v334
        %v434 = vpop.f32.mrf.mxu0
        %v435 = vadd.f32 0.0, %v434
        %436 = vmatmul.f32.gmra.mxu0 %v337
        %v437 = vpop.f32.mrf.mxu0
        %v438 = vadd.f32 0.0, %v437
        %439 = vmatmul.f32.gmra.mxu0 %v340
        %v440 = vpop.f32.mrf.mxu0
        %v441 = vadd.f32 0.0, %v440
        %442 = vmatmul.f32.gmra.mxu0 %v343
        %v443 = vpop.f32.mrf.mxu0
        %v444 = vadd.f32 0.0, %v443
        %445 = vmatmul.f32.gmra.mxu0 %v346
        %v446 = vpop.f32.mrf.mxu0
        %v447 = vadd.f32 0.0, %v446
        %448 = vdwg.mxu0
        %449 = vmatpush.msra.mxu0 0.0
        %450 = vmatpush.msra.mxu0 0.0
        %451 = vmatpush.msra.mxu0 0.0
        %452 = vmatpush.msra.mxu0 0.0
        %453 = vmatpush.msra.mxu0 0.0
        %454 = vmatpush.msra.mxu0 0.0
        %455 = vmatpush.msra.mxu0 0.0
        %456 = vmatpush.msra.mxu0 0.0
        %457 = vmatpush.msra.mxu0 0.0
        %458 = vmatpush.msra.mxu0 0.0
        %459 = vmatpush.msra.mxu0 0.0
        %460 = vmatpush.msra.mxu0 0.0
        %461 = vmatpush.msra.mxu0 0.0
        %462 = vmatpush.msra.mxu0 0.0
        %463 = vmatpush.msra.mxu0 %v230
        %464 = vmatpush.msra.mxu0 %v229
        %465 = vmatmul.f32.gmra.mxu0 %v265
        %v466 = vpop.f32.mrf.mxu0
        %v467 = vadd.f32 0.0, %v466
        %468 = vmatmul.f32.gmra.mxu0 %v268
        %v469 = vpop.f32.mrf.mxu0
        %v470 = vadd.f32 0.0, %v469
        %471 = vmatmul.f32.gmra.mxu0 %v271
        %v472 = vpop.f32.mrf.mxu0
        %v473 = vadd.f32 0.0, %v472
        %474 = vmatmul.f32.gmra.mxu0 %v274
        %v475 = vpop.f32.mrf.mxu0
        %v476 = vadd.f32 0.0, %v475
        %477 = vmatmul.f32.gmra.mxu0 %v277
        %v478 = vpop.f32.mrf.mxu0
        %v479 = vadd.f32 0.0, %v478
        %480 = vmatmul.f32.gmra.mxu0 %v280
        %v481 = vpop.f32.mrf.mxu0
        %v482 = vadd.f32 0.0, %v481
        %483 = vmatmul.f32.gmra.mxu0 %v283
        %v484 = vpop.f32.mrf.mxu0
        %v485 = vadd.f32 0.0, %v484
        %486 = vmatmul.f32.gmra.mxu0 %v286
        %v487 = vpop.f32.mrf.mxu0
        %v488 = vadd.f32 0.0, %v487
        %489 = vmatmul.f32.gmra.mxu0 %v289
        %v490 = vpop.f32.mrf.mxu0
        %v491 = vadd.f32 0.0, %v490
        %492 = vmatmul.f32.gmra.mxu0 %v292
        %v493 = vpop.f32.mrf.mxu0
        %v494 = vadd.f32 0.0, %v493
        %495 = vmatmul.f32.gmra.mxu0 %v295
        %v496 = vpop.f32.mrf.mxu0
        %v497 = vadd.f32 0.0, %v496
        %498 = vmatmul.f32.gmra.mxu0 %v298
        %v499 = vpop.f32.mrf.mxu0
        %v500 = vadd.f32 0.0, %v499
        %501 = vmatmul.f32.gmra.mxu0 %v301
        %v502 = vpop.f32.mrf.mxu0
        %v503 = vadd.f32 0.0, %v502
        %504 = vmatmul.f32.gmra.mxu0 %v304
        %v505 = vpop.f32.mrf.mxu0
        %v506 = vadd.f32 0.0, %v505
        %507 = vmatmul.f32.gmra.mxu0 %v307
        %v508 = vpop.f32.mrf.mxu0
        %v509 = vadd.f32 0.0, %v508
        %510 = vmatmul.f32.gmra.mxu0 %v310
        %v511 = vpop.f32.mrf.mxu0
        %v512 = vadd.f32 0.0, %v511
        %513 = vmatmul.f32.gmra.mxu0 %v313
        %v514 = vpop.f32.mrf.mxu0
        %v515 = vadd.f32 0.0, %v514
        %516 = vmatmul.f32.gmra.mxu0 %v316
        %v517 = vpop.f32.mrf.mxu0
        %v518 = vadd.f32 0.0, %v517
        %519 = vmatmul.f32.gmra.mxu0 %v319
        %v520 = vpop.f32.mrf.mxu0
        %v521 = vadd.f32 0.0, %v520
        %522 = vmatmul.f32.gmra.mxu0 %v322
        %v523 = vpop.f32.mrf.mxu0
        %v524 = vadd.f32 0.0, %v523
        %525 = vmatmul.f32.gmra.mxu0 %v325
        %v526 = vpop.f32.mrf.mxu0
        %v527 = vadd.f32 0.0, %v526
        %528 = vmatmul.f32.gmra.mxu0 %v328
        %v529 = vpop.f32.mrf.mxu0
        %v530 = vadd.f32 0.0, %v529
        %531 = vmatmul.f32.gmra.mxu0 %v331
        %v532 = vpop.f32.mrf.mxu0
        %v533 = vadd.f32 0.0, %v532
        %534 = vmatmul.f32.gmra.mxu0 %v334
        %v535 = vpop.f32.mrf.mxu0
        %v536 = vadd.f32 0.0, %v535
        %537 = vmatmul.f32.gmra.mxu0 %v337
        %v538 = vpop.f32.mrf.mxu0
        %v539 = vadd.f32 0.0, %v538
        %540 = vmatmul.f32.gmra.mxu0 %v340
        %v541 = vpop.f32.mrf.mxu0
        %v542 = vadd.f32 0.0, %v541
        %543 = vmatmul.f32.gmra.mxu0 %v343
        %v544 = vpop.f32.mrf.mxu0
        %v545 = vadd.f32 0.0, %v544
        %546 = vmatmul.f32.gmra.mxu0 %v346
        %v547 = vpop.f32.mrf.mxu0
        %v548 = vadd.f32 0.0, %v547
        %549 = vdwg.mxu0
        %550 = vmatpush.msra.mxu0 0.0
        %551 = vmatpush.msra.mxu0 0.0
        %552 = vmatpush.msra.mxu0 0.0
        %553 = vmatpush.msra.mxu0 0.0
        %554 = vmatpush.msra.mxu0 0.0
        %555 = vmatpush.msra.mxu0 0.0
        %556 = vmatpush.msra.mxu0 0.0
        %557 = vmatpush.msra.mxu0 0.0
        %558 = vmatpush.msra.mxu0 0.0
        %559 = vmatpush.msra.mxu0 0.0
        %560 = vmatpush.msra.mxu0 0.0
        %561 = vmatpush.msra.mxu0 0.0
        %562 = vmatpush.msra.mxu0 0.0
        %563 = vmatpush.msra.mxu0 0.0
        %564 = vmatpush.msra.mxu0 %v232
        %565 = vmatpush.msra.mxu0 %v231
        %566 = vmatmul.f32.gmra.mxu0 %v265
        %v567 = vpop.f32.mrf.mxu0
        %v568 = vadd.f32 0.0, %v567
        %569 = vmatmul.f32.gmra.mxu0 %v268
        %v570 = vpop.f32.mrf.mxu0
        %v571 = vadd.f32 0.0, %v570
        %572 = vmatmul.f32.gmra.mxu0 %v271
        %v573 = vpop.f32.mrf.mxu0
        %v574 = vadd.f32 0.0, %v573
        %575 = vmatmul.f32.gmra.mxu0 %v274
        %v576 = vpop.f32.mrf.mxu0
        %v577 = vadd.f32 0.0, %v576
        %578 = vmatmul.f32.gmra.mxu0 %v277
        %v579 = vpop.f32.mrf.mxu0
        %v580 = vadd.f32 0.0, %v579
        %581 = vmatmul.f32.gmra.mxu0 %v280
        %v582 = vpop.f32.mrf.mxu0
        %v583 = vadd.f32 0.0, %v582
        %584 = vmatmul.f32.gmra.mxu0 %v283
        %v585 = vpop.f32.mrf.mxu0
        %v586 = vadd.f32 0.0, %v585
        %587 = vmatmul.f32.gmra.mxu0 %v286
        %v588 = vpop.f32.mrf.mxu0
        %v589 = vadd.f32 0.0, %v588
        %590 = vmatmul.f32.gmra.mxu0 %v289
        %v591 = vpop.f32.mrf.mxu0
        %v592 = vadd.f32 0.0, %v591
        %593 = vmatmul.f32.gmra.mxu0 %v292
        %v594 = vpop.f32.mrf.mxu0
        %v595 = vadd.f32 0.0, %v594
        %596 = vmatmul.f32.gmra.mxu0 %v295
        %v597 = vpop.f32.mrf.mxu0
        %v598 = vadd.f32 0.0, %v597
        %599 = vmatmul.f32.gmra.mxu0 %v298
        %v600 = vpop.f32.mrf.mxu0
        %v601 = vadd.f32 0.0, %v600
        %602 = vmatmul.f32.gmra.mxu0 %v301
        %v603 = vpop.f32.mrf.mxu0
        %v604 = vadd.f32 0.0, %v603
        %605 = vmatmul.f32.gmra.mxu0 %v304
        %v606 = vpop.f32.mrf.mxu0
        %v607 = vadd.f32 0.0, %v606
        %608 = vmatmul.f32.gmra.mxu0 %v307
        %v609 = vpop.f32.mrf.mxu0
        %v610 = vadd.f32 0.0, %v609
        %611 = vmatmul.f32.gmra.mxu0 %v310
        %v612 = vpop.f32.mrf.mxu0
        %v613 = vadd.f32 0.0, %v612
        %614 = vmatmul.f32.gmra.mxu0 %v313
        %v615 = vpop.f32.mrf.mxu0
        %v616 = vadd.f32 0.0, %v615
        %617 = vmatmul.f32.gmra.mxu0 %v316
        %v618 = vpop.f32.mrf.mxu0
        %v619 = vadd.f32 0.0, %v618
        %620 = vmatmul.f32.gmra.mxu0 %v319
        %v621 = vpop.f32.mrf.mxu0
        %v622 = vadd.f32 0.0, %v621
        %623 = vmatmul.f32.gmra.mxu0 %v322
        %v624 = vpop.f32.mrf.mxu0
        %v625 = vadd.f32 0.0, %v624
        %626 = vmatmul.f32.gmra.mxu0 %v325
        %v627 = vpop.f32.mrf.mxu0
        %v628 = vadd.f32 0.0, %v627
        %629 = vmatmul.f32.gmra.mxu0 %v328
        %v630 = vpop.f32.mrf.mxu0
        %v631 = vadd.f32 0.0, %v630
        %632 = vmatmul.f32.gmra.mxu0 %v331
        %v633 = vpop.f32.mrf.mxu0
        %v634 = vadd.f32 0.0, %v633
        %635 = vmatmul.f32.gmra.mxu0 %v334
        %v636 = vpop.f32.mrf.mxu0
        %v637 = vadd.f32 0.0, %v636
        %638 = vmatmul.f32.gmra.mxu0 %v337
        %v639 = vpop.f32.mrf.mxu0
        %v640 = vadd.f32 0.0, %v639
        %641 = vmatmul.f32.gmra.mxu0 %v340
        %v642 = vpop.f32.mrf.mxu0
        %v643 = vadd.f32 0.0, %v642
        %644 = vmatmul.f32.gmra.mxu0 %v343
        %v645 = vpop.f32.mrf.mxu0
        %v646 = vadd.f32 0.0, %v645
        %647 = vmatmul.f32.gmra.mxu0 %v346
        %v648 = vpop.f32.mrf.mxu0
        %v649 = vadd.f32 0.0, %v648
        %650 = vdwg.mxu0
        %651 = vmatpush.msra.mxu0 0.0
        %652 = vmatpush.msra.mxu0 0.0
        %653 = vmatpush.msra.mxu0 0.0
        %654 = vmatpush.msra.mxu0 0.0
        %655 = vmatpush.msra.mxu0 0.0
        %656 = vmatpush.msra.mxu0 0.0
        %657 = vmatpush.msra.mxu0 0.0
        %658 = vmatpush.msra.mxu0 0.0
        %659 = vmatpush.msra.mxu0 0.0
        %660 = vmatpush.msra.mxu0 0.0
        %661 = vmatpush.msra.mxu0 0.0
        %662 = vmatpush.msra.mxu0 0.0
        %663 = vmatpush.msra.mxu0 0.0
        %664 = vmatpush.msra.mxu0 0.0
        %665 = vmatpush.msra.mxu0 %v234
        %666 = vmatpush.msra.mxu0 %v233
        %667 = vmatmul.f32.gmra.mxu0 %v265
        %v668 = vpop.f32.mrf.mxu0
        %v669 = vadd.f32 0.0, %v668
        %670 = vmatmul.f32.gmra.mxu0 %v268
        %v671 = vpop.f32.mrf.mxu0
        %v672 = vadd.f32 0.0, %v671
        %673 = vmatmul.f32.gmra.mxu0 %v271
        %v674 = vpop.f32.mrf.mxu0
        %v675 = vadd.f32 0.0, %v674
        %676 = vmatmul.f32.gmra.mxu0 %v274
        %v677 = vpop.f32.mrf.mxu0
        %v678 = vadd.f32 0.0, %v677
        %679 = vmatmul.f32.gmra.mxu0 %v277
        %v680 = vpop.f32.mrf.mxu0
        %v681 = vadd.f32 0.0, %v680
        %682 = vmatmul.f32.gmra.mxu0 %v280
        %v683 = vpop.f32.mrf.mxu0
        %v684 = vadd.f32 0.0, %v683
        %685 = vmatmul.f32.gmra.mxu0 %v283
        %v686 = vpop.f32.mrf.mxu0
        %v687 = vadd.f32 0.0, %v686
        %688 = vmatmul.f32.gmra.mxu0 %v286
        %v689 = vpop.f32.mrf.mxu0
        %v690 = vadd.f32 0.0, %v689
        %691 = vmatmul.f32.gmra.mxu0 %v289
        %v692 = vpop.f32.mrf.mxu0
        %v693 = vadd.f32 0.0, %v692
        %694 = vmatmul.f32.gmra.mxu0 %v292
        %v695 = vpop.f32.mrf.mxu0
        %v696 = vadd.f32 0.0, %v695
        %697 = vmatmul.f32.gmra.mxu0 %v295
        %v698 = vpop.f32.mrf.mxu0
        %v699 = vadd.f32 0.0, %v698
        %700 = vmatmul.f32.gmra.mxu0 %v298
        %v701 = vpop.f32.mrf.mxu0
        %v702 = vadd.f32 0.0, %v701
        %703 = vmatmul.f32.gmra.mxu0 %v301
        %v704 = vpop.f32.mrf.mxu0
        %v705 = vadd.f32 0.0, %v704
        %706 = vmatmul.f32.gmra.mxu0 %v304
        %v707 = vpop.f32.mrf.mxu0
        %v708 = vadd.f32 0.0, %v707
        %709 = vmatmul.f32.gmra.mxu0 %v307
        %v710 = vpop.f32.mrf.mxu0
        %v711 = vadd.f32 0.0, %v710
        %712 = vmatmul.f32.gmra.mxu0 %v310
        %v713 = vpop.f32.mrf.mxu0
        %v714 = vadd.f32 0.0, %v713
        %715 = vmatmul.f32.gmra.mxu0 %v313
        %v716 = vpop.f32.mrf.mxu0
        %v717 = vadd.f32 0.0, %v716
        %718 = vmatmul.f32.gmra.mxu0 %v316
        %v719 = vpop.f32.mrf.mxu0
        %v720 = vadd.f32 0.0, %v719
        %721 = vmatmul.f32.gmra.mxu0 %v319
        %v722 = vpop.f32.mrf.mxu0
        %v723 = vadd.f32 0.0, %v722
        %724 = vmatmul.f32.gmra.mxu0 %v322
        %v725 = vpop.f32.mrf.mxu0
        %v726 = vadd.f32 0.0, %v725
        %727 = vmatmul.f32.gmra.mxu0 %v325
        %v728 = vpop.f32.mrf.mxu0
        %v729 = vadd.f32 0.0, %v728
        %730 = vmatmul.f32.gmra.mxu0 %v328
        %v731 = vpop.f32.mrf.mxu0
        %v732 = vadd.f32 0.0, %v731
        %733 = vmatmul.f32.gmra.mxu0 %v331
        %v734 = vpop.f32.mrf.mxu0
        %v735 = vadd.f32 0.0, %v734
        %736 = vmatmul.f32.gmra.mxu0 %v334
        %v737 = vpop.f32.mrf.mxu0
        %v738 = vadd.f32 0.0, %v737
        %739 = vmatmul.f32.gmra.mxu0 %v337
        %v740 = vpop.f32.mrf.mxu0
        %v741 = vadd.f32 0.0, %v740
        %742 = vmatmul.f32.gmra.mxu0 %v340
        %v743 = vpop.f32.mrf.mxu0
        %v744 = vadd.f32 0.0, %v743
        %745 = vmatmul.f32.gmra.mxu0 %v343
        %v746 = vpop.f32.mrf.mxu0
        %v747 = vadd.f32 0.0, %v746
        %748 = vmatmul.f32.gmra.mxu0 %v346
        %v749 = vpop.f32.mrf.mxu0
        %v750 = vadd.f32 0.0, %v749
        %751 = vdwg.mxu0
        %v752 = vld [vmem:[#allocation7] sm:$0xff]
        %v753 = vld [vmem:[#allocation7 + $0x8] sm:$0xff]
        %v754 = vld [vmem:[#allocation7 + $0x10] sm:$0xff]
        %v755 = vld [vmem:[#allocation7 + $0x18] sm:$0xff]
        %v757 = vsel %vm263, %v366, 0
        %v760 = vsel %vm263, %v369, 0
        %v763 = vsel %vm263, %v372, 0
        %v766 = vsel %vm263, %v375, 0
        %v769 = vsel %vm263, %v378, 0
        %v772 = vsel %vm263, %v381, 0
        %v775 = vsel %vm263, %v384, 0
        %v778 = vsel %vm263, %v387, 0
        %v781 = vsel %vm263, %v390, 0
        %v784 = vsel %vm263, %v393, 0
        %v787 = vsel %vm263, %v396, 0
        %v790 = vsel %vm263, %v399, 0
        %v793 = vsel %vm263, %v402, 0
        %v796 = vsel %vm263, %v405, 0
        %v799 = vsel %vm263, %v408, 0
        %v802 = vsel %vm263, %v411, 0
        %v805 = vsel %vm263, %v414, 0
        %v808 = vsel %vm263, %v417, 0
        %v811 = vsel %vm263, %v420, 0
        %v814 = vsel %vm263, %v423, 0
        %v817 = vsel %vm263, %v426, 0
        %v820 = vsel %vm263, %v429, 0
        %v823 = vsel %vm263, %v432, 0
        %v826 = vsel %vm263, %v435, 0
        %v829 = vsel %vm263, %v438, 0
        %v832 = vsel %vm263, %v441, 0
        %v835 = vsel %vm263, %v444, 0
        %v838 = vsel %vm263, %v447, 0
        %v841 = vsel %vm263, %v467, 0
        %v844 = vsel %vm263, %v470, 0
        %v847 = vsel %vm263, %v473, 0
        %v850 = vsel %vm263, %v476, 0
        %v853 = vsel %vm263, %v479, 0
        %v856 = vsel %vm263, %v482, 0
        %v859 = vsel %vm263, %v485, 0
        %v862 = vsel %vm263, %v488, 0
        %v865 = vsel %vm263, %v491, 0
        %v868 = vsel %vm263, %v494, 0
        %v871 = vsel %vm263, %v497, 0
        %v874 = vsel %vm263, %v500, 0
        %v877 = vsel %vm263, %v503, 0
        %v880 = vsel %vm263, %v506, 0
        %v883 = vsel %vm263, %v509, 0
        %v886 = vsel %vm263, %v512, 0
        %v889 = vsel %vm263, %v515, 0
        %v892 = vsel %vm263, %v518, 0
        %v895 = vsel %vm263, %v521, 0
        %v898 = vsel %vm263, %v524, 0
        %v901 = vsel %vm263, %v527, 0
        %v904 = vsel %vm263, %v530, 0
        %v907 = vsel %vm263, %v533, 0
        %v910 = vsel %vm263, %v536, 0
        %v913 = vsel %vm263, %v539, 0
        %v916 = vsel %vm263, %v542, 0
        %v919 = vsel %vm263, %v545, 0
        %v922 = vsel %vm263, %v548, 0
        %v925 = vsel %vm263, %v568, 0
        %v928 = vsel %vm263, %v571, 0
        %v931 = vsel %vm263, %v574, 0
        %v934 = vsel %vm263, %v577, 0
        %v937 = vsel %vm263, %v580, 0
        %v940 = vsel %vm263, %v583, 0
        %v943 = vsel %vm263, %v586, 0
        %v946 = vsel %vm263, %v589, 0
        %v949 = vsel %vm263, %v592, 0
        %v952 = vsel %vm263, %v595, 0
        %v955 = vsel %vm263, %v598, 0
        %v958 = vsel %vm263, %v601, 0
        %v961 = vsel %vm263, %v604, 0
        %v964 = vsel %vm263, %v607, 0
        %v967 = vsel %vm263, %v610, 0
        %v970 = vsel %vm263, %v613, 0
        %v973 = vsel %vm263, %v616, 0
        %v976 = vsel %vm263, %v619, 0
        %v979 = vsel %vm263, %v622, 0
        %v982 = vsel %vm263, %v625, 0
        %v985 = vsel %vm263, %v628, 0
        %v988 = vsel %vm263, %v631, 0
        %v991 = vsel %vm263, %v634, 0
        %v994 = vsel %vm263, %v637, 0
        %v997 = vsel %vm263, %v640, 0
        %v1000 = vsel %vm263, %v643, 0
        %v1003 = vsel %vm263, %v646, 0
        %v1006 = vsel %vm263, %v649, 0
        %v1009 = vsel %vm263, %v669, 0
        %v1012 = vsel %vm263, %v672, 0
        %v1015 = vsel %vm263, %v675, 0
        %v1018 = vsel %vm263, %v678, 0
        %v1021 = vsel %vm263, %v681, 0
        %v1024 = vsel %vm263, %v684, 0
        %v1027 = vsel %vm263, %v687, 0
        %v1030 = vsel %vm263, %v690, 0
        %v1033 = vsel %vm263, %v693, 0
        %v1036 = vsel %vm263, %v696, 0
        %v1039 = vsel %vm263, %v699, 0
        %v1042 = vsel %vm263, %v702, 0
        %v1045 = vsel %vm263, %v705, 0
        %v1048 = vsel %vm263, %v708, 0
        %v1051 = vsel %vm263, %v711, 0
        %v1054 = vsel %vm263, %v714, 0
        %v1057 = vsel %vm263, %v717, 0
        %v1060 = vsel %vm263, %v720, 0
        %v1063 = vsel %vm263, %v723, 0
        %v1066 = vsel %vm263, %v726, 0
        %v1069 = vsel %vm263, %v729, 0
        %v1072 = vsel %vm263, %v732, 0
        %v1075 = vsel %vm263, %v735, 0
        %v1078 = vsel %vm263, %v738, 0
        %v1081 = vsel %vm263, %v741, 0
        %v1084 = vsel %vm263, %v744, 0
        %v1087 = vsel %vm263, %v747, 0
        %v1090 = vsel %vm263, %v750, 0
        %1092 = vmatpush.msra.mxu0 0.0
        %1093 = vmatpush.msra.mxu0 0.0
        %1094 = vmatpush.msra.mxu0 0.0
        %1095 = vmatpush.msra.mxu0 0.0
        %1096 = vmatpush.msra.mxu0 0.0
        %1097 = vmatpush.msra.mxu0 0.0
        %1098 = vmatpush.msra.mxu0 0.0
        %1099 = vmatpush.msra.mxu0 0.0
        %1100 = vmatpush.msra.mxu0 0.0
        %1101 = vmatpush.msra.mxu0 0.0
        %1102 = vmatpush.msra.mxu0 0.0
        %1103 = vmatpush.msra.mxu0 0.0
        %1104 = vmatpush.msra.mxu0 0.0
        %1105 = vmatpush.msra.mxu0 0.0
        %1106 = vmatpush.msra.mxu0 %v754
        %1107 = vmatpush.msra.mxu0 %v752
        %1108 = vmatmul.f32.gmra.mxu0 %v757
        %v1109 = vpop.f32.mrf.mxu0
        %v1110 = vadd.f32 0.0, %v1109
        %1111 = vmatmul.f32.gmra.mxu0 %v760
        %v1112 = vpop.f32.mrf.mxu0
        %v1113 = vadd.f32 0.0, %v1112
        %1114 = vmatmul.f32.gmra.mxu0 %v763
        %v1115 = vpop.f32.mrf.mxu0
        %v1116 = vadd.f32 0.0, %v1115
        %1117 = vmatmul.f32.gmra.mxu0 %v766
        %v1118 = vpop.f32.mrf.mxu0
        %v1119 = vadd.f32 0.0, %v1118
        %1120 = vmatmul.f32.gmra.mxu0 %v769
        %v1121 = vpop.f32.mrf.mxu0
        %v1122 = vadd.f32 0.0, %v1121
        %1123 = vmatmul.f32.gmra.mxu0 %v772
        %v1124 = vpop.f32.mrf.mxu0
        %v1125 = vadd.f32 0.0, %v1124
        %1126 = vmatmul.f32.gmra.mxu0 %v775
        %v1127 = vpop.f32.mrf.mxu0
        %v1128 = vadd.f32 0.0, %v1127
        %1129 = vmatmul.f32.gmra.mxu0 %v778
        %v1130 = vpop.f32.mrf.mxu0
        %v1131 = vadd.f32 0.0, %v1130
        %1132 = vmatmul.f32.gmra.mxu0 %v781
        %v1133 = vpop.f32.mrf.mxu0
        %v1134 = vadd.f32 0.0, %v1133
        %1135 = vmatmul.f32.gmra.mxu0 %v784
        %v1136 = vpop.f32.mrf.mxu0
        %v1137 = vadd.f32 0.0, %v1136
        %1138 = vmatmul.f32.gmra.mxu0 %v787
        %v1139 = vpop.f32.mrf.mxu0
        %v1140 = vadd.f32 0.0, %v1139
        %1141 = vmatmul.f32.gmra.mxu0 %v790
        %v1142 = vpop.f32.mrf.mxu0
        %v1143 = vadd.f32 0.0, %v1142
        %1144 = vmatmul.f32.gmra.mxu0 %v793
        %v1145 = vpop.f32.mrf.mxu0
        %v1146 = vadd.f32 0.0, %v1145
        %1147 = vmatmul.f32.gmra.mxu0 %v796
        %v1148 = vpop.f32.mrf.mxu0
        %v1149 = vadd.f32 0.0, %v1148
        %1150 = vmatmul.f32.gmra.mxu0 %v799
        %v1151 = vpop.f32.mrf.mxu0
        %v1152 = vadd.f32 0.0, %v1151
        %1153 = vmatmul.f32.gmra.mxu0 %v802
        %v1154 = vpop.f32.mrf.mxu0
        %v1155 = vadd.f32 0.0, %v1154
        %1156 = vmatmul.f32.gmra.mxu0 %v805
        %v1157 = vpop.f32.mrf.mxu0
        %v1158 = vadd.f32 0.0, %v1157
        %1159 = vmatmul.f32.gmra.mxu0 %v808
        %v1160 = vpop.f32.mrf.mxu0
        %v1161 = vadd.f32 0.0, %v1160
        %1162 = vmatmul.f32.gmra.mxu0 %v811
        %v1163 = vpop.f32.mrf.mxu0
        %v1164 = vadd.f32 0.0, %v1163
        %1165 = vmatmul.f32.gmra.mxu0 %v814
        %v1166 = vpop.f32.mrf.mxu0
        %v1167 = vadd.f32 0.0, %v1166
        %1168 = vmatmul.f32.gmra.mxu0 %v817
        %v1169 = vpop.f32.mrf.mxu0
        %v1170 = vadd.f32 0.0, %v1169
        %1171 = vmatmul.f32.gmra.mxu0 %v820
        %v1172 = vpop.f32.mrf.mxu0
        %v1173 = vadd.f32 0.0, %v1172
        %1174 = vmatmul.f32.gmra.mxu0 %v823
        %v1175 = vpop.f32.mrf.mxu0
        %v1176 = vadd.f32 0.0, %v1175
        %1177 = vmatmul.f32.gmra.mxu0 %v826
        %v1178 = vpop.f32.mrf.mxu0
        %v1179 = vadd.f32 0.0, %v1178
        %1180 = vmatmul.f32.gmra.mxu0 %v829
        %v1181 = vpop.f32.mrf.mxu0
        %v1182 = vadd.f32 0.0, %v1181
        %1183 = vmatmul.f32.gmra.mxu0 %v832
        %v1184 = vpop.f32.mrf.mxu0
        %v1185 = vadd.f32 0.0, %v1184
        %1186 = vmatmul.f32.gmra.mxu0 %v835
        %v1187 = vpop.f32.mrf.mxu0
        %v1188 = vadd.f32 0.0, %v1187
        %1189 = vmatmul.f32.gmra.mxu0 %v838
        %v1190 = vpop.f32.mrf.mxu0
        %v1191 = vadd.f32 0.0, %v1190
        %1192 = vmatmul.f32.gmra.mxu0 %v841
        %v1193 = vpop.f32.mrf.mxu0
        %v1194 = vadd.f32 0.0, %v1193
        %1195 = vmatmul.f32.gmra.mxu0 %v844
        %v1196 = vpop.f32.mrf.mxu0
        %v1197 = vadd.f32 0.0, %v1196
        %1198 = vmatmul.f32.gmra.mxu0 %v847
        %v1199 = vpop.f32.mrf.mxu0
        %v1200 = vadd.f32 0.0, %v1199
        %1201 = vmatmul.f32.gmra.mxu0 %v850
        %v1202 = vpop.f32.mrf.mxu0
        %v1203 = vadd.f32 0.0, %v1202
        %1204 = vmatmul.f32.gmra.mxu0 %v853
        %v1205 = vpop.f32.mrf.mxu0
        %v1206 = vadd.f32 0.0, %v1205
        %1207 = vmatmul.f32.gmra.mxu0 %v856
        %v1208 = vpop.f32.mrf.mxu0
        %v1209 = vadd.f32 0.0, %v1208
        %1210 = vmatmul.f32.gmra.mxu0 %v859
        %v1211 = vpop.f32.mrf.mxu0
        %v1212 = vadd.f32 0.0, %v1211
        %1213 = vmatmul.f32.gmra.mxu0 %v862
        %v1214 = vpop.f32.mrf.mxu0
        %v1215 = vadd.f32 0.0, %v1214
        %1216 = vmatmul.f32.gmra.mxu0 %v865
        %v1217 = vpop.f32.mrf.mxu0
        %v1218 = vadd.f32 0.0, %v1217
        %1219 = vmatmul.f32.gmra.mxu0 %v868
        %v1220 = vpop.f32.mrf.mxu0
        %v1221 = vadd.f32 0.0, %v1220
        %1222 = vmatmul.f32.gmra.mxu0 %v871
        %v1223 = vpop.f32.mrf.mxu0
        %v1224 = vadd.f32 0.0, %v1223
        %1225 = vmatmul.f32.gmra.mxu0 %v874
        %v1226 = vpop.f32.mrf.mxu0
        %v1227 = vadd.f32 0.0, %v1226
        %1228 = vmatmul.f32.gmra.mxu0 %v877
        %v1229 = vpop.f32.mrf.mxu0
        %v1230 = vadd.f32 0.0, %v1229
        %1231 = vmatmul.f32.gmra.mxu0 %v880
        %v1232 = vpop.f32.mrf.mxu0
        %v1233 = vadd.f32 0.0, %v1232
        %1234 = vmatmul.f32.gmra.mxu0 %v883
        %v1235 = vpop.f32.mrf.mxu0
        %v1236 = vadd.f32 0.0, %v1235
        %1237 = vmatmul.f32.gmra.mxu0 %v886
        %v1238 = vpop.f32.mrf.mxu0
        %v1239 = vadd.f32 0.0, %v1238
        %1240 = vmatmul.f32.gmra.mxu0 %v889
        %v1241 = vpop.f32.mrf.mxu0
        %v1242 = vadd.f32 0.0, %v1241
        %1243 = vmatmul.f32.gmra.mxu0 %v892
        %v1244 = vpop.f32.mrf.mxu0
        %v1245 = vadd.f32 0.0, %v1244
        %1246 = vmatmul.f32.gmra.mxu0 %v895
        %v1247 = vpop.f32.mrf.mxu0
        %v1248 = vadd.f32 0.0, %v1247
        %1249 = vmatmul.f32.gmra.mxu0 %v898
        %v1250 = vpop.f32.mrf.mxu0
        %v1251 = vadd.f32 0.0, %v1250
        %1252 = vmatmul.f32.gmra.mxu0 %v901
        %v1253 = vpop.f32.mrf.mxu0
        %v1254 = vadd.f32 0.0, %v1253
        %1255 = vmatmul.f32.gmra.mxu0 %v904
        %v1256 = vpop.f32.mrf.mxu0
        %v1257 = vadd.f32 0.0, %v1256
        %1258 = vmatmul.f32.gmra.mxu0 %v907
        %v1259 = vpop.f32.mrf.mxu0
        %v1260 = vadd.f32 0.0, %v1259
        %1261 = vmatmul.f32.gmra.mxu0 %v910
        %v1262 = vpop.f32.mrf.mxu0
        %v1263 = vadd.f32 0.0, %v1262
        %1264 = vmatmul.f32.gmra.mxu0 %v913
        %v1265 = vpop.f32.mrf.mxu0
        %v1266 = vadd.f32 0.0, %v1265
        %1267 = vmatmul.f32.gmra.mxu0 %v916
        %v1268 = vpop.f32.mrf.mxu0
        %v1269 = vadd.f32 0.0, %v1268
        %1270 = vmatmul.f32.gmra.mxu0 %v919
        %v1271 = vpop.f32.mrf.mxu0
        %v1272 = vadd.f32 0.0, %v1271
        %1273 = vmatmul.f32.gmra.mxu0 %v922
        %v1274 = vpop.f32.mrf.mxu0
        %v1275 = vadd.f32 0.0, %v1274
        %1276 = vmatmul.f32.gmra.mxu0 %v925
        %v1277 = vpop.f32.mrf.mxu0
        %v1278 = vadd.f32 0.0, %v1277
        %1279 = vmatmul.f32.gmra.mxu0 %v928
        %v1280 = vpop.f32.mrf.mxu0
        %v1281 = vadd.f32 0.0, %v1280
        %1282 = vmatmul.f32.gmra.mxu0 %v931
        %v1283 = vpop.f32.mrf.mxu0
        %v1284 = vadd.f32 0.0, %v1283
        %1285 = vmatmul.f32.gmra.mxu0 %v934
        %v1286 = vpop.f32.mrf.mxu0
        %v1287 = vadd.f32 0.0, %v1286
        %1288 = vmatmul.f32.gmra.mxu0 %v937
        %v1289 = vpop.f32.mrf.mxu0
        %v1290 = vadd.f32 0.0, %v1289
        %1291 = vmatmul.f32.gmra.mxu0 %v940
        %v1292 = vpop.f32.mrf.mxu0
        %v1293 = vadd.f32 0.0, %v1292
        %1294 = vmatmul.f32.gmra.mxu0 %v943
        %v1295 = vpop.f32.mrf.mxu0
        %v1296 = vadd.f32 0.0, %v1295
        %1297 = vmatmul.f32.gmra.mxu0 %v946
        %v1298 = vpop.f32.mrf.mxu0
        %v1299 = vadd.f32 0.0, %v1298
        %1300 = vmatmul.f32.gmra.mxu0 %v949
        %v1301 = vpop.f32.mrf.mxu0
        %v1302 = vadd.f32 0.0, %v1301
        %1303 = vmatmul.f32.gmra.mxu0 %v952
        %v1304 = vpop.f32.mrf.mxu0
        %v1305 = vadd.f32 0.0, %v1304
        %1306 = vmatmul.f32.gmra.mxu0 %v955
        %v1307 = vpop.f32.mrf.mxu0
        %v1308 = vadd.f32 0.0, %v1307
        %1309 = vmatmul.f32.gmra.mxu0 %v958
        %v1310 = vpop.f32.mrf.mxu0
        %v1311 = vadd.f32 0.0, %v1310
        %1312 = vmatmul.f32.gmra.mxu0 %v961
        %v1313 = vpop.f32.mrf.mxu0
        %v1314 = vadd.f32 0.0, %v1313
        %1315 = vmatmul.f32.gmra.mxu0 %v964
        %v1316 = vpop.f32.mrf.mxu0
        %v1317 = vadd.f32 0.0, %v1316
        %1318 = vmatmul.f32.gmra.mxu0 %v967
        %v1319 = vpop.f32.mrf.mxu0
        %v1320 = vadd.f32 0.0, %v1319
        %1321 = vmatmul.f32.gmra.mxu0 %v970
        %v1322 = vpop.f32.mrf.mxu0
        %v1323 = vadd.f32 0.0, %v1322
        %1324 = vmatmul.f32.gmra.mxu0 %v973
        %v1325 = vpop.f32.mrf.mxu0
        %v1326 = vadd.f32 0.0, %v1325
        %1327 = vmatmul.f32.gmra.mxu0 %v976
        %v1328 = vpop.f32.mrf.mxu0
        %v1329 = vadd.f32 0.0, %v1328
        %1330 = vmatmul.f32.gmra.mxu0 %v979
        %v1331 = vpop.f32.mrf.mxu0
        %v1332 = vadd.f32 0.0, %v1331
        %1333 = vmatmul.f32.gmra.mxu0 %v982
        %v1334 = vpop.f32.mrf.mxu0
        %v1335 = vadd.f32 0.0, %v1334
        %1336 = vmatmul.f32.gmra.mxu0 %v985
        %v1337 = vpop.f32.mrf.mxu0
        %v1338 = vadd.f32 0.0, %v1337
        %1339 = vmatmul.f32.gmra.mxu0 %v988
        %v1340 = vpop.f32.mrf.mxu0
        %v1341 = vadd.f32 0.0, %v1340
        %1342 = vmatmul.f32.gmra.mxu0 %v991
        %v1343 = vpop.f32.mrf.mxu0
        %v1344 = vadd.f32 0.0, %v1343
        %1345 = vmatmul.f32.gmra.mxu0 %v994
        %v1346 = vpop.f32.mrf.mxu0
        %v1347 = vadd.f32 0.0, %v1346
        %1348 = vmatmul.f32.gmra.mxu0 %v997
        %v1349 = vpop.f32.mrf.mxu0
        %v1350 = vadd.f32 0.0, %v1349
        %1351 = vmatmul.f32.gmra.mxu0 %v1000
        %v1352 = vpop.f32.mrf.mxu0
        %v1353 = vadd.f32 0.0, %v1352
        %1354 = vmatmul.f32.gmra.mxu0 %v1003
        %v1355 = vpop.f32.mrf.mxu0
        %v1356 = vadd.f32 0.0, %v1355
        %1357 = vmatmul.f32.gmra.mxu0 %v1006
        %v1358 = vpop.f32.mrf.mxu0
        %v1359 = vadd.f32 0.0, %v1358
        %1360 = vmatmul.f32.gmra.mxu0 %v1009
        %v1361 = vpop.f32.mrf.mxu0
        %v1362 = vadd.f32 0.0, %v1361
        %1363 = vmatmul.f32.gmra.mxu0 %v1012
        %v1364 = vpop.f32.mrf.mxu0
        %v1365 = vadd.f32 0.0, %v1364
        %1366 = vmatmul.f32.gmra.mxu0 %v1015
        %v1367 = vpop.f32.mrf.mxu0
        %v1368 = vadd.f32 0.0, %v1367
        %1369 = vmatmul.f32.gmra.mxu0 %v1018
        %v1370 = vpop.f32.mrf.mxu0
        %v1371 = vadd.f32 0.0, %v1370
        %1372 = vmatmul.f32.gmra.mxu0 %v1021
        %v1373 = vpop.f32.mrf.mxu0
        %v1374 = vadd.f32 0.0, %v1373
        %1375 = vmatmul.f32.gmra.mxu0 %v1024
        %v1376 = vpop.f32.mrf.mxu0
        %v1377 = vadd.f32 0.0, %v1376
        %1378 = vmatmul.f32.gmra.mxu0 %v1027
        %v1379 = vpop.f32.mrf.mxu0
        %v1380 = vadd.f32 0.0, %v1379
        %1381 = vmatmul.f32.gmra.mxu0 %v1030
        %v1382 = vpop.f32.mrf.mxu0
        %v1383 = vadd.f32 0.0, %v1382
        %1384 = vmatmul.f32.gmra.mxu0 %v1033
        %v1385 = vpop.f32.mrf.mxu0
        %v1386 = vadd.f32 0.0, %v1385
        %1387 = vmatmul.f32.gmra.mxu0 %v1036
        %v1388 = vpop.f32.mrf.mxu0
        %v1389 = vadd.f32 0.0, %v1388
        %1390 = vmatmul.f32.gmra.mxu0 %v1039
        %v1391 = vpop.f32.mrf.mxu0
        %v1392 = vadd.f32 0.0, %v1391
        %1393 = vmatmul.f32.gmra.mxu0 %v1042
        %v1394 = vpop.f32.mrf.mxu0
        %v1395 = vadd.f32 0.0, %v1394
        %1396 = vmatmul.f32.gmra.mxu0 %v1045
        %v1397 = vpop.f32.mrf.mxu0
        %v1398 = vadd.f32 0.0, %v1397
        %1399 = vmatmul.f32.gmra.mxu0 %v1048
        %v1400 = vpop.f32.mrf.mxu0
        %v1401 = vadd.f32 0.0, %v1400
        %1402 = vmatmul.f32.gmra.mxu0 %v1051
        %v1403 = vpop.f32.mrf.mxu0
        %v1404 = vadd.f32 0.0, %v1403
        %1405 = vmatmul.f32.gmra.mxu0 %v1054
        %v1406 = vpop.f32.mrf.mxu0
        %v1407 = vadd.f32 0.0, %v1406
        %1408 = vmatmul.f32.gmra.mxu0 %v1057
        %v1409 = vpop.f32.mrf.mxu0
        %v1410 = vadd.f32 0.0, %v1409
        %1411 = vmatmul.f32.gmra.mxu0 %v1060
        %v1412 = vpop.f32.mrf.mxu0
        %v1413 = vadd.f32 0.0, %v1412
        %1414 = vmatmul.f32.gmra.mxu0 %v1063
        %v1415 = vpop.f32.mrf.mxu0
        %v1416 = vadd.f32 0.0, %v1415
        %1417 = vmatmul.f32.gmra.mxu0 %v1066
        %v1418 = vpop.f32.mrf.mxu0
        %v1419 = vadd.f32 0.0, %v1418
        %1420 = vmatmul.f32.gmra.mxu0 %v1069
        %v1421 = vpop.f32.mrf.mxu0
        %v1422 = vadd.f32 0.0, %v1421
        %1423 = vmatmul.f32.gmra.mxu0 %v1072
        %v1424 = vpop.f32.mrf.mxu0
        %v1425 = vadd.f32 0.0, %v1424
        %1426 = vmatmul.f32.gmra.mxu0 %v1075
        %v1427 = vpop.f32.mrf.mxu0
        %v1428 = vadd.f32 0.0, %v1427
        %1429 = vmatmul.f32.gmra.mxu0 %v1078
        %v1430 = vpop.f32.mrf.mxu0
        %v1431 = vadd.f32 0.0, %v1430
        %1432 = vmatmul.f32.gmra.mxu0 %v1081
        %v1433 = vpop.f32.mrf.mxu0
        %v1434 = vadd.f32 0.0, %v1433
        %1435 = vmatmul.f32.gmra.mxu0 %v1084
        %v1436 = vpop.f32.mrf.mxu0
        %v1437 = vadd.f32 0.0, %v1436
        %1438 = vmatmul.f32.gmra.mxu0 %v1087
        %v1439 = vpop.f32.mrf.mxu0
        %v1440 = vadd.f32 0.0, %v1439
        %1441 = vmatmul.f32.gmra.mxu0 %v1090
        %v1442 = vpop.f32.mrf.mxu0
        %v1443 = vadd.f32 0.0, %v1442
        %1444 = vdwg.mxu0
        %1445 = vmatpush.msra.mxu0 0.0
        %1446 = vmatpush.msra.mxu0 0.0
        %1447 = vmatpush.msra.mxu0 0.0
        %1448 = vmatpush.msra.mxu0 0.0
        %1449 = vmatpush.msra.mxu0 0.0
        %1450 = vmatpush.msra.mxu0 0.0
        %1451 = vmatpush.msra.mxu0 0.0
        %1452 = vmatpush.msra.mxu0 0.0
        %1453 = vmatpush.msra.mxu0 0.0
        %1454 = vmatpush.msra.mxu0 0.0
        %1455 = vmatpush.msra.mxu0 0.0
        %1456 = vmatpush.msra.mxu0 0.0
        %1457 = vmatpush.msra.mxu0 0.0
        %1458 = vmatpush.msra.mxu0 0.0
        %1459 = vmatpush.msra.mxu0 %v755
        %1460 = vmatpush.msra.mxu0 %v753
        %1461 = vmatmul.f32.gmra.mxu0 %v757
        %v1462 = vpop.f32.mrf.mxu0
        %v1463 = vadd.f32 0.0, %v1462
        %1464 = vmatmul.f32.gmra.mxu0 %v760
        %v1465 = vpop.f32.mrf.mxu0
        %v1466 = vadd.f32 0.0, %v1465
        %1467 = vmatmul.f32.gmra.mxu0 %v763
        %v1468 = vpop.f32.mrf.mxu0
        %v1469 = vadd.f32 0.0, %v1468
        %1470 = vmatmul.f32.gmra.mxu0 %v766
        %v1471 = vpop.f32.mrf.mxu0
        %v1472 = vadd.f32 0.0, %v1471
        %1473 = vmatmul.f32.gmra.mxu0 %v769
        %v1474 = vpop.f32.mrf.mxu0
        %v1475 = vadd.f32 0.0, %v1474
        %1476 = vmatmul.f32.gmra.mxu0 %v772
        %v1477 = vpop.f32.mrf.mxu0
        %v1478 = vadd.f32 0.0, %v1477
        %1479 = vmatmul.f32.gmra.mxu0 %v775
        %v1480 = vpop.f32.mrf.mxu0
        %v1481 = vadd.f32 0.0, %v1480
        %1482 = vmatmul.f32.gmra.mxu0 %v778
        %v1483 = vpop.f32.mrf.mxu0
        %v1484 = vadd.f32 0.0, %v1483
        %1485 = vmatmul.f32.gmra.mxu0 %v781
        %v1486 = vpop.f32.mrf.mxu0
        %v1487 = vadd.f32 0.0, %v1486
        %1488 = vmatmul.f32.gmra.mxu0 %v784
        %v1489 = vpop.f32.mrf.mxu0
        %v1490 = vadd.f32 0.0, %v1489
        %1491 = vmatmul.f32.gmra.mxu0 %v787
        %v1492 = vpop.f32.mrf.mxu0
        %v1493 = vadd.f32 0.0, %v1492
        %1494 = vmatmul.f32.gmra.mxu0 %v790
        %v1495 = vpop.f32.mrf.mxu0
        %v1496 = vadd.f32 0.0, %v1495
        %1497 = vmatmul.f32.gmra.mxu0 %v793
        %v1498 = vpop.f32.mrf.mxu0
        %v1499 = vadd.f32 0.0, %v1498
        %1500 = vmatmul.f32.gmra.mxu0 %v796
        %v1501 = vpop.f32.mrf.mxu0
        %v1502 = vadd.f32 0.0, %v1501
        %1503 = vmatmul.f32.gmra.mxu0 %v799
        %v1504 = vpop.f32.mrf.mxu0
        %v1505 = vadd.f32 0.0, %v1504
        %1506 = vmatmul.f32.gmra.mxu0 %v802
        %v1507 = vpop.f32.mrf.mxu0
        %v1508 = vadd.f32 0.0, %v1507
        %1509 = vmatmul.f32.gmra.mxu0 %v805
        %v1510 = vpop.f32.mrf.mxu0
        %v1511 = vadd.f32 0.0, %v1510
        %1512 = vmatmul.f32.gmra.mxu0 %v808
        %v1513 = vpop.f32.mrf.mxu0
        %v1514 = vadd.f32 0.0, %v1513
        %1515 = vmatmul.f32.gmra.mxu0 %v811
        %v1516 = vpop.f32.mrf.mxu0
        %v1517 = vadd.f32 0.0, %v1516
        %1518 = vmatmul.f32.gmra.mxu0 %v814
        %v1519 = vpop.f32.mrf.mxu0
        %v1520 = vadd.f32 0.0, %v1519
        %1521 = vmatmul.f32.gmra.mxu0 %v817
        %v1522 = vpop.f32.mrf.mxu0
        %v1523 = vadd.f32 0.0, %v1522
        %1524 = vmatmul.f32.gmra.mxu0 %v820
        %v1525 = vpop.f32.mrf.mxu0
        %v1526 = vadd.f32 0.0, %v1525
        %1527 = vmatmul.f32.gmra.mxu0 %v823
        %v1528 = vpop.f32.mrf.mxu0
        %v1529 = vadd.f32 0.0, %v1528
        %1530 = vmatmul.f32.gmra.mxu0 %v826
        %v1531 = vpop.f32.mrf.mxu0
        %v1532 = vadd.f32 0.0, %v1531
        %1533 = vmatmul.f32.gmra.mxu0 %v829
        %v1534 = vpop.f32.mrf.mxu0
        %v1535 = vadd.f32 0.0, %v1534
        %1536 = vmatmul.f32.gmra.mxu0 %v832
        %v1537 = vpop.f32.mrf.mxu0
        %v1538 = vadd.f32 0.0, %v1537
        %1539 = vmatmul.f32.gmra.mxu0 %v835
        %v1540 = vpop.f32.mrf.mxu0
        %v1541 = vadd.f32 0.0, %v1540
        %1542 = vmatmul.f32.gmra.mxu0 %v838
        %v1543 = vpop.f32.mrf.mxu0
        %v1544 = vadd.f32 0.0, %v1543
        %1545 = vmatmul.f32.gmra.mxu0 %v841
        %v1546 = vpop.f32.mrf.mxu0
        %v1547 = vadd.f32 0.0, %v1546
        %1548 = vmatmul.f32.gmra.mxu0 %v844
        %v1549 = vpop.f32.mrf.mxu0
        %v1550 = vadd.f32 0.0, %v1549
        %1551 = vmatmul.f32.gmra.mxu0 %v847
        %v1552 = vpop.f32.mrf.mxu0
        %v1553 = vadd.f32 0.0, %v1552
        %1554 = vmatmul.f32.gmra.mxu0 %v850
        %v1555 = vpop.f32.mrf.mxu0
        %v1556 = vadd.f32 0.0, %v1555
        %1557 = vmatmul.f32.gmra.mxu0 %v853
        %v1558 = vpop.f32.mrf.mxu0
        %v1559 = vadd.f32 0.0, %v1558
        %1560 = vmatmul.f32.gmra.mxu0 %v856
        %v1561 = vpop.f32.mrf.mxu0
        %v1562 = vadd.f32 0.0, %v1561
        %1563 = vmatmul.f32.gmra.mxu0 %v859
        %v1564 = vpop.f32.mrf.mxu0
        %v1565 = vadd.f32 0.0, %v1564
        %1566 = vmatmul.f32.gmra.mxu0 %v862
        %v1567 = vpop.f32.mrf.mxu0
        %v1568 = vadd.f32 0.0, %v1567
        %1569 = vmatmul.f32.gmra.mxu0 %v865
        %v1570 = vpop.f32.mrf.mxu0
        %v1571 = vadd.f32 0.0, %v1570
        %1572 = vmatmul.f32.gmra.mxu0 %v868
        %v1573 = vpop.f32.mrf.mxu0
        %v1574 = vadd.f32 0.0, %v1573
        %1575 = vmatmul.f32.gmra.mxu0 %v871
        %v1576 = vpop.f32.mrf.mxu0
        %v1577 = vadd.f32 0.0, %v1576
        %1578 = vmatmul.f32.gmra.mxu0 %v874
        %v1579 = vpop.f32.mrf.mxu0
        %v1580 = vadd.f32 0.0, %v1579
        %1581 = vmatmul.f32.gmra.mxu0 %v877
        %v1582 = vpop.f32.mrf.mxu0
        %v1583 = vadd.f32 0.0, %v1582
        %1584 = vmatmul.f32.gmra.mxu0 %v880
        %v1585 = vpop.f32.mrf.mxu0
        %v1586 = vadd.f32 0.0, %v1585
        %1587 = vmatmul.f32.gmra.mxu0 %v883
        %v1588 = vpop.f32.mrf.mxu0
        %v1589 = vadd.f32 0.0, %v1588
        %1590 = vmatmul.f32.gmra.mxu0 %v886
        %v1591 = vpop.f32.mrf.mxu0
        %v1592 = vadd.f32 0.0, %v1591
        %1593 = vmatmul.f32.gmra.mxu0 %v889
        %v1594 = vpop.f32.mrf.mxu0
        %v1595 = vadd.f32 0.0, %v1594
        %1596 = vmatmul.f32.gmra.mxu0 %v892
        %v1597 = vpop.f32.mrf.mxu0
        %v1598 = vadd.f32 0.0, %v1597
        %1599 = vmatmul.f32.gmra.mxu0 %v895
        %v1600 = vpop.f32.mrf.mxu0
        %v1601 = vadd.f32 0.0, %v1600
        %1602 = vmatmul.f32.gmra.mxu0 %v898
        %v1603 = vpop.f32.mrf.mxu0
        %v1604 = vadd.f32 0.0, %v1603
        %1605 = vmatmul.f32.gmra.mxu0 %v901
        %v1606 = vpop.f32.mrf.mxu0
        %v1607 = vadd.f32 0.0, %v1606
        %1608 = vmatmul.f32.gmra.mxu0 %v904
        %v1609 = vpop.f32.mrf.mxu0
        %v1610 = vadd.f32 0.0, %v1609
        %1611 = vmatmul.f32.gmra.mxu0 %v907
        %v1612 = vpop.f32.mrf.mxu0
        %v1613 = vadd.f32 0.0, %v1612
        %1614 = vmatmul.f32.gmra.mxu0 %v910
        %v1615 = vpop.f32.mrf.mxu0
        %v1616 = vadd.f32 0.0, %v1615
        %1617 = vmatmul.f32.gmra.mxu0 %v913
        %v1618 = vpop.f32.mrf.mxu0
        %v1619 = vadd.f32 0.0, %v1618
        %1620 = vmatmul.f32.gmra.mxu0 %v916
        %v1621 = vpop.f32.mrf.mxu0
        %v1622 = vadd.f32 0.0, %v1621
        %1623 = vmatmul.f32.gmra.mxu0 %v919
        %v1624 = vpop.f32.mrf.mxu0
        %v1625 = vadd.f32 0.0, %v1624
        %1626 = vmatmul.f32.gmra.mxu0 %v922
        %v1627 = vpop.f32.mrf.mxu0
        %v1628 = vadd.f32 0.0, %v1627
        %1629 = vmatmul.f32.gmra.mxu0 %v925
        %v1630 = vpop.f32.mrf.mxu0
        %v1631 = vadd.f32 0.0, %v1630
        %1632 = vmatmul.f32.gmra.mxu0 %v928
        %v1633 = vpop.f32.mrf.mxu0
        %v1634 = vadd.f32 0.0, %v1633
        %1635 = vmatmul.f32.gmra.mxu0 %v931
        %v1636 = vpop.f32.mrf.mxu0
        %v1637 = vadd.f32 0.0, %v1636
        %1638 = vmatmul.f32.gmra.mxu0 %v934
        %v1639 = vpop.f32.mrf.mxu0
        %v1640 = vadd.f32 0.0, %v1639
        %1641 = vmatmul.f32.gmra.mxu0 %v937
        %v1642 = vpop.f32.mrf.mxu0
        %v1643 = vadd.f32 0.0, %v1642
        %1644 = vmatmul.f32.gmra.mxu0 %v940
        %v1645 = vpop.f32.mrf.mxu0
        %v1646 = vadd.f32 0.0, %v1645
        %1647 = vmatmul.f32.gmra.mxu0 %v943
        %v1648 = vpop.f32.mrf.mxu0
        %v1649 = vadd.f32 0.0, %v1648
        %1650 = vmatmul.f32.gmra.mxu0 %v946
        %v1651 = vpop.f32.mrf.mxu0
        %v1652 = vadd.f32 0.0, %v1651
        %1653 = vmatmul.f32.gmra.mxu0 %v949
        %v1654 = vpop.f32.mrf.mxu0
        %v1655 = vadd.f32 0.0, %v1654
        %1656 = vmatmul.f32.gmra.mxu0 %v952
        %v1657 = vpop.f32.mrf.mxu0
        %v1658 = vadd.f32 0.0, %v1657
        %1659 = vmatmul.f32.gmra.mxu0 %v955
        %v1660 = vpop.f32.mrf.mxu0
        %v1661 = vadd.f32 0.0, %v1660
        %1662 = vmatmul.f32.gmra.mxu0 %v958
        %v1663 = vpop.f32.mrf.mxu0
        %v1664 = vadd.f32 0.0, %v1663
        %1665 = vmatmul.f32.gmra.mxu0 %v961
        %v1666 = vpop.f32.mrf.mxu0
        %v1667 = vadd.f32 0.0, %v1666
        %1668 = vmatmul.f32.gmra.mxu0 %v964
        %v1669 = vpop.f32.mrf.mxu0
        %v1670 = vadd.f32 0.0, %v1669
        %1671 = vmatmul.f32.gmra.mxu0 %v967
        %v1672 = vpop.f32.mrf.mxu0
        %v1673 = vadd.f32 0.0, %v1672
        %1674 = vmatmul.f32.gmra.mxu0 %v970
        %v1675 = vpop.f32.mrf.mxu0
        %v1676 = vadd.f32 0.0, %v1675
        %1677 = vmatmul.f32.gmra.mxu0 %v973
        %v1678 = vpop.f32.mrf.mxu0
        %v1679 = vadd.f32 0.0, %v1678
        %1680 = vmatmul.f32.gmra.mxu0 %v976
        %v1681 = vpop.f32.mrf.mxu0
        %v1682 = vadd.f32 0.0, %v1681
        %1683 = vmatmul.f32.gmra.mxu0 %v979
        %v1684 = vpop.f32.mrf.mxu0
        %v1685 = vadd.f32 0.0, %v1684
        %1686 = vmatmul.f32.gmra.mxu0 %v982
        %v1687 = vpop.f32.mrf.mxu0
        %v1688 = vadd.f32 0.0, %v1687
        %1689 = vmatmul.f32.gmra.mxu0 %v985
        %v1690 = vpop.f32.mrf.mxu0
        %v1691 = vadd.f32 0.0, %v1690
        %1692 = vmatmul.f32.gmra.mxu0 %v988
        %v1693 = vpop.f32.mrf.mxu0
        %v1694 = vadd.f32 0.0, %v1693
        %1695 = vmatmul.f32.gmra.mxu0 %v991
        %v1696 = vpop.f32.mrf.mxu0
        %v1697 = vadd.f32 0.0, %v1696
        %1698 = vmatmul.f32.gmra.mxu0 %v994
        %v1699 = vpop.f32.mrf.mxu0
        %v1700 = vadd.f32 0.0, %v1699
        %1701 = vmatmul.f32.gmra.mxu0 %v997
        %v1702 = vpop.f32.mrf.mxu0
        %v1703 = vadd.f32 0.0, %v1702
        %1704 = vmatmul.f32.gmra.mxu0 %v1000
        %v1705 = vpop.f32.mrf.mxu0
        %v1706 = vadd.f32 0.0, %v1705
        %1707 = vmatmul.f32.gmra.mxu0 %v1003
        %v1708 = vpop.f32.mrf.mxu0
        %v1709 = vadd.f32 0.0, %v1708
        %1710 = vmatmul.f32.gmra.mxu0 %v1006
        %v1711 = vpop.f32.mrf.mxu0
        %v1712 = vadd.f32 0.0, %v1711
        %1713 = vmatmul.f32.gmra.mxu0 %v1009
        %v1714 = vpop.f32.mrf.mxu0
        %v1715 = vadd.f32 0.0, %v1714
        %1716 = vmatmul.f32.gmra.mxu0 %v1012
        %v1717 = vpop.f32.mrf.mxu0
        %v1718 = vadd.f32 0.0, %v1717
        %1719 = vmatmul.f32.gmra.mxu0 %v1015
        %v1720 = vpop.f32.mrf.mxu0
        %v1721 = vadd.f32 0.0, %v1720
        %1722 = vmatmul.f32.gmra.mxu0 %v1018
        %v1723 = vpop.f32.mrf.mxu0
        %v1724 = vadd.f32 0.0, %v1723
        %1725 = vmatmul.f32.gmra.mxu0 %v1021
        %v1726 = vpop.f32.mrf.mxu0
        %v1727 = vadd.f32 0.0, %v1726
        %1728 = vmatmul.f32.gmra.mxu0 %v1024
        %v1729 = vpop.f32.mrf.mxu0
        %v1730 = vadd.f32 0.0, %v1729
        %1731 = vmatmul.f32.gmra.mxu0 %v1027
        %v1732 = vpop.f32.mrf.mxu0
        %v1733 = vadd.f32 0.0, %v1732
        %1734 = vmatmul.f32.gmra.mxu0 %v1030
        %v1735 = vpop.f32.mrf.mxu0
        %v1736 = vadd.f32 0.0, %v1735
        %1737 = vmatmul.f32.gmra.mxu0 %v1033
        %v1738 = vpop.f32.mrf.mxu0
        %v1739 = vadd.f32 0.0, %v1738
        %1740 = vmatmul.f32.gmra.mxu0 %v1036
        %v1741 = vpop.f32.mrf.mxu0
        %v1742 = vadd.f32 0.0, %v1741
        %1743 = vmatmul.f32.gmra.mxu0 %v1039
        %v1744 = vpop.f32.mrf.mxu0
        %v1745 = vadd.f32 0.0, %v1744
        %1746 = vmatmul.f32.gmra.mxu0 %v1042
        %v1747 = vpop.f32.mrf.mxu0
        %v1748 = vadd.f32 0.0, %v1747
        %1749 = vmatmul.f32.gmra.mxu0 %v1045
        %v1750 = vpop.f32.mrf.mxu0
        %v1751 = vadd.f32 0.0, %v1750
        %1752 = vmatmul.f32.gmra.mxu0 %v1048
        %v1753 = vpop.f32.mrf.mxu0
        %v1754 = vadd.f32 0.0, %v1753
        %1755 = vmatmul.f32.gmra.mxu0 %v1051
        %v1756 = vpop.f32.mrf.mxu0
        %v1757 = vadd.f32 0.0, %v1756
        %1758 = vmatmul.f32.gmra.mxu0 %v1054
        %v1759 = vpop.f32.mrf.mxu0
        %v1760 = vadd.f32 0.0, %v1759
        %1761 = vmatmul.f32.gmra.mxu0 %v1057
        %v1762 = vpop.f32.mrf.mxu0
        %v1763 = vadd.f32 0.0, %v1762
        %1764 = vmatmul.f32.gmra.mxu0 %v1060
        %v1765 = vpop.f32.mrf.mxu0
        %v1766 = vadd.f32 0.0, %v1765
        %1767 = vmatmul.f32.gmra.mxu0 %v1063
        %v1768 = vpop.f32.mrf.mxu0
        %v1769 = vadd.f32 0.0, %v1768
        %1770 = vmatmul.f32.gmra.mxu0 %v1066
        %v1771 = vpop.f32.mrf.mxu0
        %v1772 = vadd.f32 0.0, %v1771
        %1773 = vmatmul.f32.gmra.mxu0 %v1069
        %v1774 = vpop.f32.mrf.mxu0
        %v1775 = vadd.f32 0.0, %v1774
        %1776 = vmatmul.f32.gmra.mxu0 %v1072
        %v1777 = vpop.f32.mrf.mxu0
        %v1778 = vadd.f32 0.0, %v1777
        %1779 = vmatmul.f32.gmra.mxu0 %v1075
        %v1780 = vpop.f32.mrf.mxu0
        %v1781 = vadd.f32 0.0, %v1780
        %1782 = vmatmul.f32.gmra.mxu0 %v1078
        %v1783 = vpop.f32.mrf.mxu0
        %v1784 = vadd.f32 0.0, %v1783
        %1785 = vmatmul.f32.gmra.mxu0 %v1081
        %v1786 = vpop.f32.mrf.mxu0
        %v1787 = vadd.f32 0.0, %v1786
        %1788 = vmatmul.f32.gmra.mxu0 %v1084
        %v1789 = vpop.f32.mrf.mxu0
        %v1790 = vadd.f32 0.0, %v1789
        %1791 = vmatmul.f32.gmra.mxu0 %v1087
        %v1792 = vpop.f32.mrf.mxu0
        %v1793 = vadd.f32 0.0, %v1792
        %1794 = vmatmul.f32.gmra.mxu0 %v1090
        %v1795 = vpop.f32.mrf.mxu0
        %v1796 = vadd.f32 0.0, %v1795
        %1797 = vdwg.mxu0
        %1798 = vst [vmem:[%s224] sm:$0xff] %v1110
        %vm1799 = vcmask 785408
        %1800 = vst.msk [vmem:[%s224 + $0x8] sm:$0xff] %vm1799, %v1463
        %1801 = vst [vmem:[%s224 + $0x10] sm:$0xff] %v1113
        %1802 = vst.msk [vmem:[%s224 + $0x18] sm:$0xff] %vm1799, %v1466
        %1803 = vst [vmem:[%s224 + $0x20] sm:$0xff] %v1116
        %1804 = vst.msk [vmem:[%s224 + $0x28] sm:$0xff] %vm1799, %v1469
        %1805 = vst [vmem:[%s224 + $0x30] sm:$0xff] %v1119
        %1806 = vst.msk [vmem:[%s224 + $0x38] sm:$0xff] %vm1799, %v1472
        %1807 = vst [vmem:[%s224 + $0x40] sm:$0xff] %v1122
        %1808 = vst.msk [vmem:[%s224 + $0x48] sm:$0xff] %vm1799, %v1475
        %1809 = vst [vmem:[%s224 + $0x50] sm:$0xff] %v1125
        %1810 = vst.msk [vmem:[%s224 + $0x58] sm:$0xff] %vm1799, %v1478
        %1811 = vst [vmem:[%s224 + $0x60] sm:$0xff] %v1128
        %1812 = vst.msk [vmem:[%s224 + $0x68] sm:$0xff] %vm1799, %v1481
        %1813 = vst [vmem:[%s224 + $0x70] sm:$0xff] %v1131
        %1814 = vst.msk [vmem:[%s224 + $0x78] sm:$0xff] %vm1799, %v1484
        %1815 = vst [vmem:[%s224 + $0x80] sm:$0xff] %v1134
        %1816 = vst.msk [vmem:[%s224 + $0x88] sm:$0xff] %vm1799, %v1487
        %1817 = vst [vmem:[%s224 + $0x90] sm:$0xff] %v1137
        %1818 = vst.msk [vmem:[%s224 + $0x98] sm:$0xff] %vm1799, %v1490
        %1819 = vst [vmem:[%s224 + $0xa0] sm:$0xff] %v1140
        %1820 = vst.msk [vmem:[%s224 + $0xa8] sm:$0xff] %vm1799, %v1493
        %1821 = vst [vmem:[%s224 + $0xb0] sm:$0xff] %v1143
        %1822 = vst.msk [vmem:[%s224 + $0xb8] sm:$0xff] %vm1799, %v1496
        %1823 = vst [vmem:[%s224 + $0xc0] sm:$0xff] %v1146
        %1824 = vst.msk [vmem:[%s224 + $0xc8] sm:$0xff] %vm1799, %v1499
        %1825 = vst [vmem:[%s224 + $0xd0] sm:$0xff] %v1149
        %1826 = vst.msk [vmem:[%s224 + $0xd8] sm:$0xff] %vm1799, %v1502
        %1827 = vst [vmem:[%s224 + $0xe0] sm:$0xff] %v1152
        %1828 = vst.msk [vmem:[%s224 + $0xe8] sm:$0xff] %vm1799, %v1505
        %1829 = vst [vmem:[%s224 + $0xf0] sm:$0xff] %v1155
        %1830 = vst.msk [vmem:[%s224 + $0xf8] sm:$0xff] %vm1799, %v1508
        %1831 = vst [vmem:[%s224 + $0x100] sm:$0xff] %v1158
        %1832 = vst.msk [vmem:[%s224 + $0x108] sm:$0xff] %vm1799, %v1511
        %1833 = vst [vmem:[%s224 + $0x110] sm:$0xff] %v1161
        %1834 = vst.msk [vmem:[%s224 + $0x118] sm:$0xff] %vm1799, %v1514
        %1835 = vst [vmem:[%s224 + $0x120] sm:$0xff] %v1164
        %1836 = vst.msk [vmem:[%s224 + $0x128] sm:$0xff] %vm1799, %v1517
        %1837 = vst [vmem:[%s224 + $0x130] sm:$0xff] %v1167
        %1838 = vst.msk [vmem:[%s224 + $0x138] sm:$0xff] %vm1799, %v1520
        %1839 = vst [vmem:[%s224 + $0x140] sm:$0xff] %v1170
        %1840 = vst.msk [vmem:[%s224 + $0x148] sm:$0xff] %vm1799, %v1523
        %1841 = vst [vmem:[%s224 + $0x150] sm:$0xff] %v1173
        %1842 = vst.msk [vmem:[%s224 + $0x158] sm:$0xff] %vm1799, %v1526
        %1843 = vst [vmem:[%s224 + $0x160] sm:$0xff] %v1176
        %1844 = vst.msk [vmem:[%s224 + $0x168] sm:$0xff] %vm1799, %v1529
        %1845 = vst [vmem:[%s224 + $0x170] sm:$0xff] %v1179
        %1846 = vst.msk [vmem:[%s224 + $0x178] sm:$0xff] %vm1799, %v1532
        %1847 = vst [vmem:[%s224 + $0x180] sm:$0xff] %v1182
        %1848 = vst.msk [vmem:[%s224 + $0x188] sm:$0xff] %vm1799, %v1535
        %1849 = vst [vmem:[%s224 + $0x190] sm:$0xff] %v1185
        %1850 = vst.msk [vmem:[%s224 + $0x198] sm:$0xff] %vm1799, %v1538
        %1851 = vst [vmem:[%s224 + $0x1a0] sm:$0xff] %v1188
        %1852 = vst.msk [vmem:[%s224 + $0x1a8] sm:$0xff] %vm1799, %v1541
        %1853 = vst [vmem:[%s224 + $0x1b0] sm:$0xff] %v1191
        %1854 = vst.msk [vmem:[%s224 + $0x1b8] sm:$0xff] %vm1799, %v1544
        %1855 = vst [vmem:[%s224 + $0x1c0] sm:$0xff] %v1194
        %1856 = vst.msk [vmem:[%s224 + $0x1c8] sm:$0xff] %vm1799, %v1547
        %1857 = vst [vmem:[%s224 + $0x1d0] sm:$0xff] %v1197
        %1858 = vst.msk [vmem:[%s224 + $0x1d8] sm:$0xff] %vm1799, %v1550
        %1859 = vst [vmem:[%s224 + $0x1e0] sm:$0xff] %v1200
        %1860 = vst.msk [vmem:[%s224 + $0x1e8] sm:$0xff] %vm1799, %v1553
        %1861 = vst [vmem:[%s224 + $0x1f0] sm:$0xff] %v1203
        %1862 = vst.msk [vmem:[%s224 + $0x1f8] sm:$0xff] %vm1799, %v1556
        %1863 = vst [vmem:[%s224 + $0x200] sm:$0xff] %v1206
        %1864 = vst.msk [vmem:[%s224 + $0x208] sm:$0xff] %vm1799, %v1559
        %1865 = vst [vmem:[%s224 + $0x210] sm:$0xff] %v1209
        %1866 = vst.msk [vmem:[%s224 + $0x218] sm:$0xff] %vm1799, %v1562
        %1867 = vst [vmem:[%s224 + $0x220] sm:$0xff] %v1212
        %1868 = vst.msk [vmem:[%s224 + $0x228] sm:$0xff] %vm1799, %v1565
        %1869 = vst [vmem:[%s224 + $0x230] sm:$0xff] %v1215
        %1870 = vst.msk [vmem:[%s224 + $0x238] sm:$0xff] %vm1799, %v1568
        %1871 = vst [vmem:[%s224 + $0x240] sm:$0xff] %v1218
        %1872 = vst.msk [vmem:[%s224 + $0x248] sm:$0xff] %vm1799, %v1571
        %1873 = vst [vmem:[%s224 + $0x250] sm:$0xff] %v1221
        %1874 = vst.msk [vmem:[%s224 + $0x258] sm:$0xff] %vm1799, %v1574
        %1875 = vst [vmem:[%s224 + $0x260] sm:$0xff] %v1224
        %1876 = vst.msk [vmem:[%s224 + $0x268] sm:$0xff] %vm1799, %v1577
        %1877 = vst [vmem:[%s224 + $0x270] sm:$0xff] %v1227
        %1878 = vst.msk [vmem:[%s224 + $0x278] sm:$0xff] %vm1799, %v1580
        %1879 = vst [vmem:[%s224 + $0x280] sm:$0xff] %v1230
        %1880 = vst.msk [vmem:[%s224 + $0x288] sm:$0xff] %vm1799, %v1583
        %1881 = vst [vmem:[%s224 + $0x290] sm:$0xff] %v1233
        %1882 = vst.msk [vmem:[%s224 + $0x298] sm:$0xff] %vm1799, %v1586
        %1883 = vst [vmem:[%s224 + $0x2a0] sm:$0xff] %v1236
        %1884 = vst.msk [vmem:[%s224 + $0x2a8] sm:$0xff] %vm1799, %v1589
        %1885 = vst [vmem:[%s224 + $0x2b0] sm:$0xff] %v1239
        %1886 = vst.msk [vmem:[%s224 + $0x2b8] sm:$0xff] %vm1799, %v1592
        %1887 = vst [vmem:[%s224 + $0x2c0] sm:$0xff] %v1242
        %1888 = vst.msk [vmem:[%s224 + $0x2c8] sm:$0xff] %vm1799, %v1595
        %1889 = vst [vmem:[%s224 + $0x2d0] sm:$0xff] %v1245
        %1890 = vst.msk [vmem:[%s224 + $0x2d8] sm:$0xff] %vm1799, %v1598
        %1891 = vst [vmem:[%s224 + $0x2e0] sm:$0xff] %v1248
        %1892 = vst.msk [vmem:[%s224 + $0x2e8] sm:$0xff] %vm1799, %v1601
        %1893 = vst [vmem:[%s224 + $0x2f0] sm:$0xff] %v1251
        %1894 = vst.msk [vmem:[%s224 + $0x2f8] sm:$0xff] %vm1799, %v1604
        %1895 = vst [vmem:[%s224 + $0x300] sm:$0xff] %v1254
        %1896 = vst.msk [vmem:[%s224 + $0x308] sm:$0xff] %vm1799, %v1607
        %1897 = vst [vmem:[%s224 + $0x310] sm:$0xff] %v1257
        %1898 = vst.msk [vmem:[%s224 + $0x318] sm:$0xff] %vm1799, %v1610
        %1899 = vst [vmem:[%s224 + $0x320] sm:$0xff] %v1260
        %1900 = vst.msk [vmem:[%s224 + $0x328] sm:$0xff] %vm1799, %v1613
        %1901 = vst [vmem:[%s224 + $0x330] sm:$0xff] %v1263
        %1902 = vst.msk [vmem:[%s224 + $0x338] sm:$0xff] %vm1799, %v1616
        %1903 = vst [vmem:[%s224 + $0x340] sm:$0xff] %v1266
        %1904 = vst.msk [vmem:[%s224 + $0x348] sm:$0xff] %vm1799, %v1619
        %1905 = vst [vmem:[%s224 + $0x350] sm:$0xff] %v1269
        %1906 = vst.msk [vmem:[%s224 + $0x358] sm:$0xff] %vm1799, %v1622
        %1907 = vst [vmem:[%s224 + $0x360] sm:$0xff] %v1272
        %1908 = vst.msk [vmem:[%s224 + $0x368] sm:$0xff] %vm1799, %v1625
        %1909 = vst [vmem:[%s224 + $0x370] sm:$0xff] %v1275
        %1910 = vst.msk [vmem:[%s224 + $0x378] sm:$0xff] %vm1799, %v1628
        %1911 = vst [vmem:[%s224 + $0x380] sm:$0xff] %v1278
        %1912 = vst.msk [vmem:[%s224 + $0x388] sm:$0xff] %vm1799, %v1631
        %1913 = vst [vmem:[%s224 + $0x390] sm:$0xff] %v1281
        %1914 = vst.msk [vmem:[%s224 + $0x398] sm:$0xff] %vm1799, %v1634
        %1915 = vst [vmem:[%s224 + $0x3a0] sm:$0xff] %v1284
        %1916 = vst.msk [vmem:[%s224 + $0x3a8] sm:$0xff] %vm1799, %v1637
        %1917 = vst [vmem:[%s224 + $0x3b0] sm:$0xff] %v1287
        %1918 = vst.msk [vmem:[%s224 + $0x3b8] sm:$0xff] %vm1799, %v1640
        %1919 = vst [vmem:[%s224 + $0x3c0] sm:$0xff] %v1290
        %1920 = vst.msk [vmem:[%s224 + $0x3c8] sm:$0xff] %vm1799, %v1643
        %1921 = vst [vmem:[%s224 + $0x3d0] sm:$0xff] %v1293
        %1922 = vst.msk [vmem:[%s224 + $0x3d8] sm:$0xff] %vm1799, %v1646
        %1923 = vst [vmem:[%s224 + $0x3e0] sm:$0xff] %v1296
        %1924 = vst.msk [vmem:[%s224 + $0x3e8] sm:$0xff] %vm1799, %v1649
        %1925 = vst [vmem:[%s224 + $0x3f0] sm:$0xff] %v1299
        %1926 = vst.msk [vmem:[%s224 + $0x3f8] sm:$0xff] %vm1799, %v1652
        %1927 = vst [vmem:[%s224 + $0x400] sm:$0xff] %v1302
        %1928 = vst.msk [vmem:[%s224 + $0x408] sm:$0xff] %vm1799, %v1655
        %1929 = vst [vmem:[%s224 + $0x410] sm:$0xff] %v1305
        %1930 = vst.msk [vmem:[%s224 + $0x418] sm:$0xff] %vm1799, %v1658
        %1931 = vst [vmem:[%s224 + $0x420] sm:$0xff] %v1308
        %1932 = vst.msk [vmem:[%s224 + $0x428] sm:$0xff] %vm1799, %v1661
        %1933 = vst [vmem:[%s224 + $0x430] sm:$0xff] %v1311
        %1934 = vst.msk [vmem:[%s224 + $0x438] sm:$0xff] %vm1799, %v1664
        %1935 = vst [vmem:[%s224 + $0x440] sm:$0xff] %v1314
        %1936 = vst.msk [vmem:[%s224 + $0x448] sm:$0xff] %vm1799, %v1667
        %1937 = vst [vmem:[%s224 + $0x450] sm:$0xff] %v1317
        %1938 = vst.msk [vmem:[%s224 + $0x458] sm:$0xff] %vm1799, %v1670
        %1939 = vst [vmem:[%s224 + $0x460] sm:$0xff] %v1320
        %1940 = vst.msk [vmem:[%s224 + $0x468] sm:$0xff] %vm1799, %v1673
        %1941 = vst [vmem:[%s224 + $0x470] sm:$0xff] %v1323
        %1942 = vst.msk [vmem:[%s224 + $0x478] sm:$0xff] %vm1799, %v1676
        %1943 = vst [vmem:[%s224 + $0x480] sm:$0xff] %v1326
        %1944 = vst.msk [vmem:[%s224 + $0x488] sm:$0xff] %vm1799, %v1679
        %1945 = vst [vmem:[%s224 + $0x490] sm:$0xff] %v1329
        %1946 = vst.msk [vmem:[%s224 + $0x498] sm:$0xff] %vm1799, %v1682
        %1947 = vst [vmem:[%s224 + $0x4a0] sm:$0xff] %v1332
        %1948 = vst.msk [vmem:[%s224 + $0x4a8] sm:$0xff] %vm1799, %v1685
        %1949 = vst [vmem:[%s224 + $0x4b0] sm:$0xff] %v1335
        %1950 = vst.msk [vmem:[%s224 + $0x4b8] sm:$0xff] %vm1799, %v1688
        %1951 = vst [vmem:[%s224 + $0x4c0] sm:$0xff] %v1338
        %1952 = vst.msk [vmem:[%s224 + $0x4c8] sm:$0xff] %vm1799, %v1691
        %1953 = vst [vmem:[%s224 + $0x4d0] sm:$0xff] %v1341
        %1954 = vst.msk [vmem:[%s224 + $0x4d8] sm:$0xff] %vm1799, %v1694
        %1955 = vst [vmem:[%s224 + $0x4e0] sm:$0xff] %v1344
        %1956 = vst.msk [vmem:[%s224 + $0x4e8] sm:$0xff] %vm1799, %v1697
        %1957 = vst [vmem:[%s224 + $0x4f0] sm:$0xff] %v1347
        %1958 = vst.msk [vmem:[%s224 + $0x4f8] sm:$0xff] %vm1799, %v1700
        %1959 = vst [vmem:[%s224 + $0x500] sm:$0xff] %v1350
        %1960 = vst.msk [vmem:[%s224 + $0x508] sm:$0xff] %vm1799, %v1703
        %1961 = vst [vmem:[%s224 + $0x510] sm:$0xff] %v1353
        %1962 = vst.msk [vmem:[%s224 + $0x518] sm:$0xff] %vm1799, %v1706
        %1963 = vst [vmem:[%s224 + $0x520] sm:$0xff] %v1356
        %1964 = vst.msk [vmem:[%s224 + $0x528] sm:$0xff] %vm1799, %v1709
        %1965 = vst [vmem:[%s224 + $0x530] sm:$0xff] %v1359
        %1966 = vst.msk [vmem:[%s224 + $0x538] sm:$0xff] %vm1799, %v1712
        %1967 = vst [vmem:[%s224 + $0x540] sm:$0xff] %v1362
        %1968 = vst.msk [vmem:[%s224 + $0x548] sm:$0xff] %vm1799, %v1715
        %1969 = vst [vmem:[%s224 + $0x550] sm:$0xff] %v1365
        %1970 = vst.msk [vmem:[%s224 + $0x558] sm:$0xff] %vm1799, %v1718
        %1971 = vst [vmem:[%s224 + $0x560] sm:$0xff] %v1368
        %1972 = vst.msk [vmem:[%s224 + $0x568] sm:$0xff] %vm1799, %v1721
        %1973 = vst [vmem:[%s224 + $0x570] sm:$0xff] %v1371
        %1974 = vst.msk [vmem:[%s224 + $0x578] sm:$0xff] %vm1799, %v1724
        %1975 = vst [vmem:[%s224 + $0x580] sm:$0xff] %v1374
        %1976 = vst.msk [vmem:[%s224 + $0x588] sm:$0xff] %vm1799, %v1727
        %1977 = vst [vmem:[%s224 + $0x590] sm:$0xff] %v1377
        %1978 = vst.msk [vmem:[%s224 + $0x598] sm:$0xff] %vm1799, %v1730
        %1979 = vst [vmem:[%s224 + $0x5a0] sm:$0xff] %v1380
        %1980 = vst.msk [vmem:[%s224 + $0x5a8] sm:$0xff] %vm1799, %v1733
        %1981 = vst [vmem:[%s224 + $0x5b0] sm:$0xff] %v1383
        %1982 = vst.msk [vmem:[%s224 + $0x5b8] sm:$0xff] %vm1799, %v1736
        %1983 = vst [vmem:[%s224 + $0x5c0] sm:$0xff] %v1386
        %1984 = vst.msk [vmem:[%s224 + $0x5c8] sm:$0xff] %vm1799, %v1739
        %1985 = vst [vmem:[%s224 + $0x5d0] sm:$0xff] %v1389
        %1986 = vst.msk [vmem:[%s224 + $0x5d8] sm:$0xff] %vm1799, %v1742
        %1987 = vst [vmem:[%s224 + $0x5e0] sm:$0xff] %v1392
        %1988 = vst.msk [vmem:[%s224 + $0x5e8] sm:$0xff] %vm1799, %v1745
        %1989 = vst [vmem:[%s224 + $0x5f0] sm:$0xff] %v1395
        %1990 = vst.msk [vmem:[%s224 + $0x5f8] sm:$0xff] %vm1799, %v1748
        %1991 = vst [vmem:[%s224 + $0x600] sm:$0xff] %v1398
        %1992 = vst.msk [vmem:[%s224 + $0x608] sm:$0xff] %vm1799, %v1751
        %1993 = vst [vmem:[%s224 + $0x610] sm:$0xff] %v1401
        %1994 = vst.msk [vmem:[%s224 + $0x618] sm:$0xff] %vm1799, %v1754
        %1995 = vst [vmem:[%s224 + $0x620] sm:$0xff] %v1404
        %1996 = vst.msk [vmem:[%s224 + $0x628] sm:$0xff] %vm1799, %v1757
        %1997 = vst [vmem:[%s224 + $0x630] sm:$0xff] %v1407
        %1998 = vst.msk [vmem:[%s224 + $0x638] sm:$0xff] %vm1799, %v1760
        %1999 = vst [vmem:[%s224 + $0x640] sm:$0xff] %v1410
        %2000 = vst.msk [vmem:[%s224 + $0x648] sm:$0xff] %vm1799, %v1763
        %2001 = vst [vmem:[%s224 + $0x650] sm:$0xff] %v1413
        %2002 = vst.msk [vmem:[%s224 + $0x658] sm:$0xff] %vm1799, %v1766
        %2003 = vst [vmem:[%s224 + $0x660] sm:$0xff] %v1416
        %2004 = vst.msk [vmem:[%s224 + $0x668] sm:$0xff] %vm1799, %v1769
        %2005 = vst [vmem:[%s224 + $0x670] sm:$0xff] %v1419
        %2006 = vst.msk [vmem:[%s224 + $0x678] sm:$0xff] %vm1799, %v1772
        %2007 = vst [vmem:[%s224 + $0x680] sm:$0xff] %v1422
        %2008 = vst.msk [vmem:[%s224 + $0x688] sm:$0xff] %vm1799, %v1775
        %2009 = vst [vmem:[%s224 + $0x690] sm:$0xff] %v1425
        %2010 = vst.msk [vmem:[%s224 + $0x698] sm:$0xff] %vm1799, %v1778
        %2011 = vst [vmem:[%s224 + $0x6a0] sm:$0xff] %v1428
        %2012 = vst.msk [vmem:[%s224 + $0x6a8] sm:$0xff] %vm1799, %v1781
        %2013 = vst [vmem:[%s224 + $0x6b0] sm:$0xff] %v1431
        %2014 = vst.msk [vmem:[%s224 + $0x6b8] sm:$0xff] %vm1799, %v1784
        %2015 = vst [vmem:[%s224 + $0x6c0] sm:$0xff] %v1434
        %2016 = vst.msk [vmem:[%s224 + $0x6c8] sm:$0xff] %vm1799, %v1787
        %2017 = vst [vmem:[%s224 + $0x6d0] sm:$0xff] %v1437
        %2018 = vst.msk [vmem:[%s224 + $0x6d8] sm:$0xff] %vm1799, %v1790
        %2019 = vst [vmem:[%s224 + $0x6e0] sm:$0xff] %v1440
        %2020 = vst.msk [vmem:[%s224 + $0x6e8] sm:$0xff] %vm1799, %v1793
        %2021 = vst [vmem:[%s224 + $0x6f0] sm:$0xff] %v1443
        %2022 = vst.msk [vmem:[%s224 + $0x6f8] sm:$0xff] %vm1799, %v1796
        %s2023 = sand.u32 %s97, 1
        %s2024 = scalar_lea.sflag [#allocation4], %s2023
        %s2025 = sand.u32 %s97, 1
        %s2026 = smul.addr %s2025, 1792
        %s2027 = scalar_lea.vmem [#allocation8], %s2026
        // Predicated region
        $region45: #{resize_bilinear.1} parent=31 // pred_check
          %p2028 = pneg %p107
        $region46: #{resize_bilinear.1} parent=31 // pred_check_branch
          %2030 = sbr.rel (%p2028) target = $region48
        $region47: #{resize_bilinear.1} parent=31 // pred_region
          %s2031 = smul.u32 112, %s21
          %2033 = vsyncadd %s2024, 0
          %s2034 = smul.addr %s2031, 2
          %s2035 = smul.addr %s2034, 8
          %s2036 = scalar_lea.hbm %s3, %s2035
          %s2037 = sshll.u32 %s2027, 4
          %s2038 = int_to_ptr.vmem [resolvable:$true] %s2037
          %s2039 = sshll.u32 %s2036, 4
          %s2040 = int_to_ptr.hbm [resolvable:$true] %s2039
          %2045 = dma.vmem_to_hbm [thread:$0]  %s2038, 28672, %s2040, %s2024, 256, 256, 16
        $region48: #{resize_bilinear.1} parent=31 // pred_fallthru
          _
      $region32: #{resize_bilinear.1} parent=5 // pred_fallthru
        _
      %p2046 = scmp.le.s32.totalorder 2, %s16
      // Predicated region
      $region49: #{resize_bilinear.1} parent=5 // pred_check
        %p2047 = pneg %p2046
      $region50: #{resize_bilinear.1} parent=5 // pred_check_branch
        %2049 = sbr.rel (%p2047) target = $region52
      $region51: #{resize_bilinear.1} parent=5 // pred_region
        %s2050 = ssub.s32 %s16, 2
        // Predicated region
        $region53: #{resize_bilinear.1} parent=51 // pred_check
          %p2051 = pneg %p113
        $region54: #{resize_bilinear.1} parent=51 // pred_check_branch
          %2053 = sbr.rel (%p2051) target = $region56
        $region55: #{resize_bilinear.1} parent=51 // pred_region
          %s2054 = sand.u32 %s98, 1
          %s2055 = scalar_lea.sflag [#allocation4], %s2054
          %s2056 = sand.u32 %s98, 1
          %s2057 = smul.addr %s2056, 1792
          %s2058 = scalar_lea.vmem [#allocation8], %s2057
          %2060 = dma.done %s2055, 28672
        $region56: #{resize_bilinear.1} parent=51 // pred_fallthru
          _
      $region52: #{resize_bilinear.1} parent=5 // pred_fallthru
        _
    $region6: #{resize_bilinear.1} parent=1 // loop_footer
      %s20 = sadd.s32 1, %s16
    $region7: #{resize_bilinear.1} parent=1 // loop_footer_branch
      %15 = sbr.rel target = $region3
    $region8: #{resize_bilinear.1} parent=1 // loop_exit
      _
    %2061 = vsyncpa [#allocation3], 1
    %s2062 = scalar_lea.sflag [#allocation3], 1
    %2063 = vsyncpa %s2062, 1
    %2064 = vsyncpa [#allocation6], 1
    %2065 = vsyncpa [#allocation4], 1
    %s2066 = scalar_lea.sflag [#allocation4], 1
    %2067 = vsyncpa %s2066, 1

</llo_original>
